<compile_context>
chip_gen: v5e
topology: v5e:2x2
jax: 0.10.0
libtpu: 0.0.40
codegen_flags: <defaults>
</compile_context>

<pallas_src>
import functools

import jax
import jax.numpy as jnp
from jax import lax
from jax.experimental import pallas as pl
from jax.experimental.pallas import tpu as pltpu

BN_EPS = 1e-5
NORM_EPS = 1e-12
LANE = 128


def _round_up(n, m):
    return ((n + m - 1) // m) * m


# ---------------------------------------------------------------------------
# fused kernel: encoder -> fc_z -> L2 normalize -> decoder for one batch tile
# ---------------------------------------------------------------------------
def _ae_kernel(x_ref,
               w1_ref, b1_ref,
               w2_ref, b2_ref,
               wz_ref, bz_ref,
               wd1_ref, bd1_ref,
               wd2_ref, bd2_ref,
               wd3_ref, bd3_ref,
               xrec_ref, z_ref):
    """All matmuls use bf16 operands with f32 MXU accumulation; bias-add, ReLU
    and the L2 norm stay in f32.  BatchNorm is folded into the following linear
    on the host; Dropout(0.5) is identity in eval mode."""
    bf16 = jnp.bfloat16

    # ----- encoder -----
    h = jnp.dot(x_ref[...], w1_ref[...], preferred_element_type=jnp.float32)
    h = jnp.maximum(h + b1_ref[...], 0.0)
    # Dropout(0.5) -> identity (eval); BatchNorm1d folded into (w2, b2).
    h = jnp.dot(h.astype(bf16), w2_ref[...], preferred_element_type=jnp.float32)
    h = jnp.maximum(h + b2_ref[...], 0.0)

    # ----- fc_z + L2 normalize over feature dim (f32) -----
    z = jnp.dot(h.astype(bf16), wz_ref[...], preferred_element_type=jnp.float32)
    z = z + bz_ref[...]
    # 1 / max(||z||, eps) == rsqrt(max(sum(z^2), eps^2)); rsqrt runs on the EUP.
    inv_norm = lax.rsqrt(jnp.maximum(jnp.sum(z * z, axis=1, keepdims=True),
                                     NORM_EPS * NORM_EPS))
    z_n = z * inv_norm
    z_ref[...] = z_n.astype(z_ref.dtype)

    # ----- decoder -----
    d = jnp.dot(z_n.astype(bf16), wd1_ref[...], preferred_element_type=jnp.float32)
    d = jnp.maximum(d + bd1_ref[...], 0.0)
    # Dropout(0.5) -> identity (eval); BatchNorm1d folded into (wd2, bd2).
    d = jnp.dot(d.astype(bf16), wd2_ref[...], preferred_element_type=jnp.float32)
    d = jnp.maximum(d + bd2_ref[...], 0.0)
    xr = jnp.dot(d.astype(bf16), wd3_ref[...], preferred_element_type=jnp.float32)
    xrec_ref[...] = (xr + bd3_ref[...]).astype(xrec_ref.dtype)


_PARAM_ORDER = ("w1", "b1", "w2", "b2", "wz", "bz",
                "wd1", "bd1", "wd2", "bd2", "wd3", "bd3")


# ---------------------------------------------------------------------------
# host-side parameter preparation (BN fold + lane padding + bf16 cast)
# ---------------------------------------------------------------------------
def prepare_params(raw, dim_input, z_dim):
    """Fold BatchNorm into the following linear, zero-pad feature dims to
    multiples of 128 lanes, cast weights to bf16 (biases stay f32)."""
    d1 = max(dim_input // 2, 4)
    d2 = max(dim_input // 3, 4)
    d0p, d1p, d2p, zp = (_round_up(d, LANE) for d in (dim_input, d1, d2, z_dim))

    # BN after ReLU is affine: y = s*h + (beta - s*m), s = g / sqrt(v + eps).
    # Fold exactly into the next linear:
    #   y @ W + b == h @ (s[:,None]*W) + ((beta - s*m) @ W + b)
    s1 = raw["g1"] * lax.rsqrt(raw["v1"] + BN_EPS)                   # (1, d1)
    w2f = raw["w2"] * s1.T                                           # (d1, d2)
    b2f = raw["b2"] + (raw["be1"] - s1 * raw["m1"]) @ raw["w2"]      # (1, d2)
    s2 = raw["g2"] * lax.rsqrt(raw["v2"] + BN_EPS)                   # (1, d2)
    wd2f = raw["wd2"] * s2.T                                         # (d2, d1)
    bd2f = raw["bd2"] + (raw["be2"] - s2 * raw["m2"]) @ raw["wd2"]   # (1, d1)

    def pad2d(a, r, c):
        return jnp.pad(a, ((0, r - a.shape[0]), (0, c - a.shape[1])))

    def w_(w, r, c):
        return pad2d(w, r, c).astype(jnp.bfloat16)

    def b_(b, c):
        return pad2d(b, 1, c).astype(jnp.float32)

    return {
        "w1": w_(raw["w1"], d0p, d1p),   "b1": b_(raw["b1"], d1p),
        "w2": w_(w2f, d1p, d2p),         "b2": b_(b2f, d2p),
        "wz": w_(raw["wz"], d2p, zp),    "bz": b_(raw["bz"], zp),
        "wd1": w_(raw["wd1"], zp, d2p),  "bd1": b_(raw["bd1"], d2p),
        "wd2": w_(wd2f, d2p, d1p),       "bd2": b_(bd2f, d1p),
        "wd3": w_(raw["wd3"], d1p, d0p), "bd3": b_(raw["bd3"], d0p),
    }


# ---------------------------------------------------------------------------
# generation-aware configuration (resolved once, outside the hot path)
# ---------------------------------------------------------------------------
def _chip_kind():
    try:
        return jax.devices()[0].device_kind.lower()
    except Exception:
        return ""


def resolve_config(batch, prepared, *, batch_tile=None, param_buffer_count=None,
                   vmem_limit_bytes=None):
    """Pick batch_tile / param buffering / VMEM limit for the current chip."""
    kind = _chip_kind()
    is_v7 = "v7" in kind
    num_tc = 2 if is_v7 else 1            # v7x: 2 TensorCores/chip, else 1

    if vmem_limit_bytes is None:
        # v7x has 64 MiB physical VMEM per TC -> stay <= 48 MiB scoped;
        # v5e/v6e have 128 MiB -> allow up to 96 MiB before streaming weights.
        vmem_limit_bytes = (48 << 20) if is_v7 else (96 << 20)

    if batch_tile is None:
        # One big tile per TensorCore: fewest grid steps while keeping both
        # cores busy on v7x.  Multiple of 16 rows (bf16 sublane pack), cap 1024.
        tile = min(1024, max(16, batch // num_tc))
        tile -= tile % 16
        tile = max(tile, 16)
        while tile > 16 and batch % tile:
            tile -= 16
        batch_tile = tile

    if param_buffer_count is None:
        # The 12 weight/bias blocks are grid-invariant; default double-buffering
        # wastes VMEM once they get large (matters first on v7x).  0 == default.
        param_bytes = sum(int(prepared[k].size) * prepared[k].dtype.itemsize
                          for k in _PARAM_ORDER)
        param_buffer_count = 0 if 2 * param_bytes <= vmem_limit_bytes // 4 else 1

    return batch_tile, param_buffer_count, vmem_limit_bytes


# ---------------------------------------------------------------------------
# hot-path entry point: padded bf16 input in, padded bf16 outputs out.
# No per-call pad/cast/slice HBM passes -- fuse those where x is produced.
# ---------------------------------------------------------------------------
@functools.partial(jax.jit, static_argnames=("batch_tile", "param_buffer_count",
                                             "vmem_limit_bytes"))
def autoencoder_forward_padded(x_p, prepared, *, batch_tile,
                               param_buffer_count=0,
                               vmem_limit_bytes=96 << 20):
    B, d0p = x_p.shape
    assert batch_tile % 16 == 0 and B % batch_tile == 0, \
        "batch must be a multiple of batch_tile (multiple of 16, bf16 sublanes)"

    d1p = prepared["w1"].shape[1]
    d2p = prepared["w2"].shape[1]
    zp = prepared["wz"].shape[1]
    param_args = [prepared[k] for k in _PARAM_ORDER]

    def const_spec(p):
        # Bind ndim explicitly (avoid Python late-binding in comprehensions).
        idx = lambda i, _nd=p.ndim: (0,) * _nd
        if param_buffer_count and param_buffer_count > 0:
            # Single-buffer the grid-invariant parameters (saves VMEM when the
            # folded weights are large, e.g. large dim_input on v7x).
            return pl.BlockSpec(p.shape, idx,
                                pipeline_mode=pl.Buffered(param_buffer_count))
        return pl.BlockSpec(p.shape, idx)

    x_spec = pl.BlockSpec((batch_tile, d0p), lambda i: (i, 0))
    param_specs = [const_spec(p) for p in param_args]
    # bf16 outputs: halves output HBM / vst traffic; accuracy is already set by
    # the bf16 matmul chain.
    out_shapes = (jax.ShapeDtypeStruct((B, d0p), jnp.bfloat16),
                  jax.ShapeDtypeStruct((B, zp), jnp.bfloat16))
    out_specs = [pl.BlockSpec((batch_tile, d0p), lambda i: (i, 0)),
                 pl.BlockSpec((batch_tile, zp), lambda i: (i, 0))]

    # Advisory cost estimate so XLA schedules surrounding ops around the call.
    mm = d0p * d1p + d1p * d2p + d2p * zp + zp * d2p + d2p * d1p + d1p * d0p
    weight_bytes = sum(int(p.size) * p.dtype.itemsize for p in param_args)
    cost = pl.CostEstimate(
        flops=2 * B * mm,
        transcendentals=B,  # one rsqrt per row (L2 normalize)
        bytes_accessed=int(x_p.size) * 2 + weight_bytes + (B * d0p + B * zp) * 2,
    )

    return pl.pallas_call(
        _ae_kernel,
        out_shape=out_shapes,
        grid_spec=pltpu.PrefetchScalarGridSpec(
            num_scalar_prefetch=0,
            grid=(B // batch_tile,),
            in_specs=[x_spec] + param_specs,
            out_specs=out_specs,
        ),
        compiler_params=pltpu.CompilerParams(
            dimension_semantics=("parallel",),     # batch tiles across TCs (v7x)
            vmem_limit_bytes=vmem_limit_bytes),
        cost_estimate=cost,
    )(x_p, *param_args)


# ---------------------------------------------------------------------------
# convenience wrapper matching forward(): pads/casts x and un-pads outputs.
# For steady-state pipelines, pre-pad/cast x where it is produced and call
# autoencoder_forward_padded directly (and slice lazily downstream).
# ---------------------------------------------------------------------------
def autoencoder_forward(x, prepared, *, z_dim, batch_tile=None,
                        param_buffer_count=None, vmem_limit_bytes=None):
    """Returns (x_recon, z_, None, None) like the PyTorch module (eval mode)."""
    B, D = x.shape
    d0p = prepared["w1"].shape[0]
    batch_tile, pbc, vmem = resolve_config(
        B, prepared, batch_tile=batch_tile,
        param_buffer_count=param_buffer_count, vmem_limit_bytes=vmem_limit_bytes)

    # Note: for very large dim_input keep x in f32 for the first matmul if the
    # 3e-2-style tolerance gets tight (error grows ~sqrt(K)).
    x_p = jnp.pad(x, ((0, 0), (0, d0p - D))).astype(jnp.bfloat16)
    x_rec_p, z_p = autoencoder_forward_padded(
        x_p, prepared, batch_tile=batch_tile, param_buffer_count=pbc,
        vmem_limit_bytes=vmem)
    return x_rec_p[:, :D], z_p[:, :z_dim], None, None


# ---------------------------------------------------------------------------
# deterministic init + pure-JAX reference
# ---------------------------------------------------------------------------
def init_params(dim_input, z_dim=32, seed=0):
    """Deterministic kaiming-normal init matching the PyTorch module's shapes.
    Weights stored as (in_features, out_features) so y = x @ W + b."""
    dims = [dim_input, max(dim_input // 2, 4), max(dim_input // 3, 4), z_dim]
    key = jax.random.PRNGKey(seed)

    def kaiming(key, fan_in, fan_out):
        std = (2.0 / fan_in) ** 0.5
        return jax.random.normal(key, (fan_in, fan_out), dtype=jnp.float32) * std

    keys = jax.random.split(key, 6)
    p = {}
    # encoder: Linear(d0->d1), ReLU, Dropout, BN(d1), Linear(d1->d2), ReLU
    p["w1"] = kaiming(keys[0], dims[0], dims[1])
    p["b1"] = jnp.zeros((1, dims[1]), jnp.float32)
    p["g1"] = jnp.ones((1, dims[1]), jnp.float32)
    p["be1"] = jnp.zeros((1, dims[1]), jnp.float32)
    p["m1"] = jnp.zeros((1, dims[1]), jnp.float32)   # BN running_mean
    p["v1"] = jnp.ones((1, dims[1]), jnp.float32)    # BN running_var
    p["w2"] = kaiming(keys[1], dims[1], dims[2])
    p["b2"] = jnp.zeros((1, dims[2]), jnp.float32)
    # fc_z: Linear(d2 -> z_dim)
    p["wz"] = kaiming(keys[2], dims[2], z_dim)
    p["bz"] = jnp.zeros((1, z_dim), jnp.float32)
    # decoder: Linear(z->d2), ReLU, Dropout, BN(d2), Linear(d2->d1), ReLU, Linear(d1->d0)
    p["wd1"] = kaiming(keys[3], z_dim, dims[2])
    p["bd1"] = jnp.zeros((1, dims[2]), jnp.float32)
    p["g2"] = jnp.ones((1, dims[2]), jnp.float32)
    p["be2"] = jnp.zeros((1, dims[2]), jnp.float32)
    p["m2"] = jnp.zeros((1, dims[2]), jnp.float32)
    p["v2"] = jnp.ones((1, dims[2]), jnp.float32)
    p["wd2"] = kaiming(keys[4], dims[2], dims[1])
    p["bd2"] = jnp.zeros((1, dims[1]), jnp.float32)
    p["wd3"] = kaiming(keys[5], dims[1], dims[0])
    p["bd3"] = jnp.zeros((1, dims[0]), jnp.float32)
    return p


def reference_forward(x, p):
    """Pure-JAX f32 reference of the same forward pass (eval mode, unfolded BN)."""
    h = jnp.maximum(x @ p["w1"] + p["b1"], 0.0)
    h = (h - p["m1"]) / jnp.sqrt(p["v1"] + BN_EPS) * p["g1"] + p["be1"]
    h = jnp.maximum(h @ p["w2"] + p["b2"], 0.0)
    z = h @ p["wz"] + p["bz"]
    z_n = z / jnp.maximum(jnp.sqrt(jnp.sum(z * z, axis=1, keepdims=True)), NORM_EPS)
    d = jnp.maximum(z_n @ p["wd1"] + p["bd1"], 0.0)
    d = (d - p["m2"]) / jnp.sqrt(p["v2"] + BN_EPS) * p["g2"] + p["be2"]
    d = jnp.maximum(d @ p["wd2"] + p["bd2"], 0.0)
    xr = d @ p["wd3"] + p["bd3"]
    return xr, z_n


if __name__ == "__main__":
    batch = 256          # v5e/v6e: one 256-row tile; v7x: two 128-row tiles (both TCs)
    dim_input = 64
    z_dim = 32

    key = jax.random.PRNGKey(0)
    x = jax.random.normal(key, (batch, dim_input), dtype=jnp.float32)

    raw_params = init_params(dim_input, z_dim=z_dim, seed=0)
    prepared = prepare_params(raw_params, dim_input, z_dim)   # BN-folded, padded, bf16

    x_recon, z_, mu, logvar = autoencoder_forward(x, prepared, z_dim=z_dim)
    x_recon = jax.block_until_ready(x_recon)
    z_ = jax.block_until_ready(z_)

    # correctness check against a pure-JAX f32 reference (bf16 matmul/output tolerance)
    xr_ref, z_ref = reference_forward(x, raw_params)
    assert x_recon.shape == (batch, dim_input) and z_.shape == (batch, z_dim)
    assert mu is None and logvar is None
    assert jnp.allclose(z_.astype(jnp.float32), z_ref, atol=3e-2, rtol=3e-2), "z_ mismatch"
    assert jnp.allclose(x_recon.astype(jnp.float32), xr_ref, atol=3e-2, rtol=3e-2), \
        "x_recon mismatch"

    print("KERNEL_OK")
</pallas_src>

<mosaic_0001>
module attributes {stable_mosaic.version = 11 : i64} {
  func.func @_ae_kernel(%arg0: i32, %arg1: memref<256x128xbf16, #tpu.memory_space<vmem>>, %arg2: memref<128x128xbf16, #tpu.memory_space<vmem>>, %arg3: memref<1x128xf32, #tpu.memory_space<vmem>>, %arg4: memref<128x128xbf16, #tpu.memory_space<vmem>>, %arg5: memref<1x128xf32, #tpu.memory_space<vmem>>, %arg6: memref<128x128xbf16, #tpu.memory_space<vmem>>, %arg7: memref<1x128xf32, #tpu.memory_space<vmem>>, %arg8: memref<128x128xbf16, #tpu.memory_space<vmem>>, %arg9: memref<1x128xf32, #tpu.memory_space<vmem>>, %arg10: memref<128x128xbf16, #tpu.memory_space<vmem>>, %arg11: memref<1x128xf32, #tpu.memory_space<vmem>>, %arg12: memref<128x128xbf16, #tpu.memory_space<vmem>>, %arg13: memref<1x128xf32, #tpu.memory_space<vmem>>, %arg14: memref<256x128xbf16, #tpu.memory_space<vmem>>, %arg15: memref<256x128xbf16, #tpu.memory_space<vmem>>) attributes {dimension_semantics = [#tpu.dimension_semantics<parallel>], iteration_bounds = array<i64: 1>, scalar_prefetch = 0 : i64, scratch_operands = 0 : i64, tpu.core_type = #tpu.core_type<tc>, window_params = [{transform_indices = @transform_0, window_bounds = array<i64: 256, 128>}, {pipeline_mode = #tpu.pipeline_mode<synchronous>, transform_indices = @transform_1, window_bounds = array<i64: 128, 128>}, {pipeline_mode = #tpu.pipeline_mode<synchronous>, transform_indices = @transform_2, window_bounds = array<i64: 1, 128>}, {pipeline_mode = #tpu.pipeline_mode<synchronous>, transform_indices = @transform_3, window_bounds = array<i64: 128, 128>}, {pipeline_mode = #tpu.pipeline_mode<synchronous>, transform_indices = @transform_4, window_bounds = array<i64: 1, 128>}, {pipeline_mode = #tpu.pipeline_mode<synchronous>, transform_indices = @transform_5, window_bounds = array<i64: 128, 128>}, {pipeline_mode = #tpu.pipeline_mode<synchronous>, transform_indices = @transform_6, window_bounds = array<i64: 1, 128>}, {pipeline_mode = #tpu.pipeline_mode<synchronous>, transform_indices = @transform_7, window_bounds = array<i64: 128, 128>}, {pipeline_mode = #tpu.pipeline_mode<synchronous>, transform_indices = @transform_8, window_bounds = array<i64: 1, 128>}, {pipeline_mode = #tpu.pipeline_mode<synchronous>, transform_indices = @transform_9, window_bounds = array<i64: 128, 128>}, {pipeline_mode = #tpu.pipeline_mode<synchronous>, transform_indices = @transform_10, window_bounds = array<i64: 1, 128>}, {pipeline_mode = #tpu.pipeline_mode<synchronous>, transform_indices = @transform_11, window_bounds = array<i64: 128, 128>}, {pipeline_mode = #tpu.pipeline_mode<synchronous>, transform_indices = @transform_12, window_bounds = array<i64: 1, 128>}, {transform_indices = @transform_13, window_bounds = array<i64: 256, 128>}, {transform_indices = @transform_14, window_bounds = array<i64: 256, 128>}]} {
    %c0 = arith.constant 0 : index
    %c0_0 = arith.constant 0 : index
    %0 = vector.load %arg1[%c0, %c0_0] : memref<256x128xbf16, #tpu.memory_space<vmem>>, vector<256x128xbf16>
    %c0_1 = arith.constant 0 : index
    %c0_2 = arith.constant 0 : index
    %1 = vector.load %arg2[%c0_1, %c0_2] : memref<128x128xbf16, #tpu.memory_space<vmem>>, vector<128x128xbf16>
    %cst = arith.constant dense<0.000000e+00> : vector<256x128xf32>
    %2 = tpu.matmul %0, %1, %cst {dimension_numbers = #tpu.dot_dimension_numbers<[1], [0], [0], [1], [0, 0, 1, 1], [], []>} : vector<256x128xbf16>, vector<128x128xbf16>, vector<256x128xf32> -> vector<256x128xf32>
    %c0_3 = arith.constant 0 : index
    %c0_4 = arith.constant 0 : index
    %3 = vector.load %arg3[%c0_3, %c0_4] : memref<1x128xf32, #tpu.memory_space<vmem>>, vector<1x128xf32>
    %4 = vector.broadcast %3 : vector<1x128xf32> to vector<256x128xf32>
    %5 = arith.addf %2, %4 : vector<256x128xf32>
    %cst_5 = arith.constant 0.000000e+00 : f32
    %6 = vector.broadcast %cst_5 : f32 to vector<256x128xf32>
    %7 = arith.maximumf %5, %6 : vector<256x128xf32>
    %8 = arith.truncf %7 : vector<256x128xf32> to vector<256x128xbf16>
    %c0_6 = arith.constant 0 : index
    %c0_7 = arith.constant 0 : index
    %9 = vector.load %arg4[%c0_6, %c0_7] : memref<128x128xbf16, #tpu.memory_space<vmem>>, vector<128x128xbf16>
    %cst_8 = arith.constant dense<0.000000e+00> : vector<256x128xf32>
    %10 = tpu.matmul %8, %9, %cst_8 {dimension_numbers = #tpu.dot_dimension_numbers<[1], [0], [0], [1], [0, 0, 1, 1], [], []>} : vector<256x128xbf16>, vector<128x128xbf16>, vector<256x128xf32> -> vector<256x128xf32>
    %c0_9 = arith.constant 0 : index
    %c0_10 = arith.constant 0 : index
    %11 = vector.load %arg5[%c0_9, %c0_10] : memref<1x128xf32, #tpu.memory_space<vmem>>, vector<1x128xf32>
    %12 = vector.broadcast %11 : vector<1x128xf32> to vector<256x128xf32>
    %13 = arith.addf %10, %12 : vector<256x128xf32>
    %cst_11 = arith.constant 0.000000e+00 : f32
    %14 = vector.broadcast %cst_11 : f32 to vector<256x128xf32>
    %15 = arith.maximumf %13, %14 : vector<256x128xf32>
    %16 = arith.truncf %15 : vector<256x128xf32> to vector<256x128xbf16>
    %c0_12 = arith.constant 0 : index
    %c0_13 = arith.constant 0 : index
    %17 = vector.load %arg6[%c0_12, %c0_13] : memref<128x128xbf16, #tpu.memory_space<vmem>>, vector<128x128xbf16>
    %cst_14 = arith.constant dense<0.000000e+00> : vector<256x128xf32>
    %18 = tpu.matmul %16, %17, %cst_14 {dimension_numbers = #tpu.dot_dimension_numbers<[1], [0], [0], [1], [0, 0, 1, 1], [], []>} : vector<256x128xbf16>, vector<128x128xbf16>, vector<256x128xf32> -> vector<256x128xf32>
    %c0_15 = arith.constant 0 : index
    %c0_16 = arith.constant 0 : index
    %19 = vector.load %arg7[%c0_15, %c0_16] : memref<1x128xf32, #tpu.memory_space<vmem>>, vector<1x128xf32>
    %20 = vector.broadcast %19 : vector<1x128xf32> to vector<256x128xf32>
    %21 = arith.addf %18, %20 : vector<256x128xf32>
    %22 = arith.mulf %21, %21 : vector<256x128xf32>
    %cst_17 = arith.constant dense<0.000000e+00> : vector<256xf32>
    %23 = vector.multi_reduction <add>, %22, %cst_17 [1] : vector<256x128xf32> to vector<256xf32>
    %24 = vector.shape_cast %23 : vector<256xf32> to vector<256x1xf32>
    %cst_18 = arith.constant 1.000000e-24 : f32
    %25 = vector.broadcast %cst_18 : f32 to vector<256x1xf32>
    %26 = arith.maximumf %24, %25 : vector<256x1xf32>
    %27 = math.rsqrt %26 : vector<256x1xf32>
    %28 = vector.broadcast %27 : vector<256x1xf32> to vector<256x128xf32>
    %29 = arith.mulf %21, %28 : vector<256x128xf32>
    %30 = arith.truncf %29 : vector<256x128xf32> to vector<256x128xbf16>
    %c0_19 = arith.constant 0 : index
    %c0_20 = arith.constant 0 : index
    %31 = vector.load %arg15[%c0_19, %c0_20] : memref<256x128xbf16, #tpu.memory_space<vmem>>, vector<256x128xbf16>
    tpu.vector_store %arg15[%c0_19, %c0_20], %30 {strides = array<i32>} : memref<256x128xbf16, #tpu.memory_space<vmem>>, vector<256x128xbf16>,
    %32 = arith.truncf %29 : vector<256x128xf32> to vector<256x128xbf16>
    %c0_21 = arith.constant 0 : index
    %c0_22 = arith.constant 0 : index
    %33 = vector.load %arg8[%c0_21, %c0_22] : memref<128x128xbf16, #tpu.memory_space<vmem>>, vector<128x128xbf16>
    %cst_23 = arith.constant dense<0.000000e+00> : vector<256x128xf32>
    %34 = tpu.matmul %32, %33, %cst_23 {dimension_numbers = #tpu.dot_dimension_numbers<[1], [0], [0], [1], [0, 0, 1, 1], [], []>} : vector<256x128xbf16>, vector<128x128xbf16>, vector<256x128xf32> -> vector<256x128xf32>
    %c0_24 = arith.constant 0 : index
    %c0_25 = arith.constant 0 : index
    %35 = vector.load %arg9[%c0_24, %c0_25] : memref<1x128xf32, #tpu.memory_space<vmem>>, vector<1x128xf32>
    %36 = vector.broadcast %35 : vector<1x128xf32> to vector<256x128xf32>
    %37 = arith.addf %34, %36 : vector<256x128xf32>
    %cst_26 = arith.constant 0.000000e+00 : f32
    %38 = vector.broadcast %cst_26 : f32 to vector<256x128xf32>
    %39 = arith.maximumf %37, %38 : vector<256x128xf32>
    %40 = arith.truncf %39 : vector<256x128xf32> to vector<256x128xbf16>
    %c0_27 = arith.constant 0 : index
    %c0_28 = arith.constant 0 : index
    %41 = vector.load %arg10[%c0_27, %c0_28] : memref<128x128xbf16, #tpu.memory_space<vmem>>, vector<128x128xbf16>
    %cst_29 = arith.constant dense<0.000000e+00> : vector<256x128xf32>
    %42 = tpu.matmul %40, %41, %cst_29 {dimension_numbers = #tpu.dot_dimension_numbers<[1], [0], [0], [1], [0, 0, 1, 1], [], []>} : vector<256x128xbf16>, vector<128x128xbf16>, vector<256x128xf32> -> vector<256x128xf32>
    %c0_30 = arith.constant 0 : index
    %c0_31 = arith.constant 0 : index
    %43 = vector.load %arg11[%c0_30, %c0_31] : memref<1x128xf32, #tpu.memory_space<vmem>>, vector<1x128xf32>
    %44 = vector.broadcast %43 : vector<1x128xf32> to vector<256x128xf32>
    %45 = arith.addf %42, %44 : vector<256x128xf32>
    %cst_32 = arith.constant 0.000000e+00 : f32
    %46 = vector.broadcast %cst_32 : f32 to vector<256x128xf32>
    %47 = arith.maximumf %45, %46 : vector<256x128xf32>
    %48 = arith.truncf %47 : vector<256x128xf32> to vector<256x128xbf16>
    %c0_33 = arith.constant 0 : index
    %c0_34 = arith.constant 0 : index
    %49 = vector.load %arg12[%c0_33, %c0_34] : memref<128x128xbf16, #tpu.memory_space<vmem>>, vector<128x128xbf16>
    %cst_35 = arith.constant dense<0.000000e+00> : vector<256x128xf32>
    %50 = tpu.matmul %48, %49, %cst_35 {dimension_numbers = #tpu.dot_dimension_numbers<[1], [0], [0], [1], [0, 0, 1, 1], [], []>} : vector<256x128xbf16>, vector<128x128xbf16>, vector<256x128xf32> -> vector<256x128xf32>
    %c0_36 = arith.constant 0 : index
    %c0_37 = arith.constant 0 : index
    %51 = vector.load %arg13[%c0_36, %c0_37] : memref<1x128xf32, #tpu.memory_space<vmem>>, vector<1x128xf32>
    %52 = vector.broadcast %51 : vector<1x128xf32> to vector<256x128xf32>
    %53 = arith.addf %50, %52 : vector<256x128xf32>
    %54 = arith.truncf %53 : vector<256x128xf32> to vector<256x128xbf16>
    %c0_38 = arith.constant 0 : index
    %c0_39 = arith.constant 0 : index
    %55 = vector.load %arg14[%c0_38, %c0_39] : memref<256x128xbf16, #tpu.memory_space<vmem>>, vector<256x128xbf16>
    tpu.vector_store %arg14[%c0_38, %c0_39], %54 {strides = array<i32>} : memref<256x128xbf16, #tpu.memory_space<vmem>>, vector<256x128xbf16>,
    return
  }
  func.func @transform_0(%arg0: i32) -> (i32, i32) {
    %c0_i32 = arith.constant 0 : i32
    %c0_i32_0 = arith.constant 0 : i32
    return %arg0, %c0_i32 : i32, i32
  }
  func.func @transform_1(%arg0: i32) -> (i32, i32) {
    %c0_i32 = arith.constant 0 : i32
    %c0_i32_0 = arith.constant 0 : i32
    %c0_i32_1 = arith.constant 0 : i32
    return %c0_i32, %c0_i32_0 : i32, i32
  }
  func.func @transform_2(%arg0: i32) -> (i32, i32) {
    %c0_i32 = arith.constant 0 : i32
    %c0_i32_0 = arith.constant 0 : i32
    %c0_i32_1 = arith.constant 0 : i32
    return %c0_i32, %c0_i32_0 : i32, i32
  }
  func.func @transform_3(%arg0: i32) -> (i32, i32) {
    %c0_i32 = arith.constant 0 : i32
    %c0_i32_0 = arith.constant 0 : i32
    %c0_i32_1 = arith.constant 0 : i32
    return %c0_i32, %c0_i32_0 : i32, i32
  }
  func.func @transform_4(%arg0: i32) -> (i32, i32) {
    %c0_i32 = arith.constant 0 : i32
    %c0_i32_0 = arith.constant 0 : i32
    %c0_i32_1 = arith.constant 0 : i32
    return %c0_i32, %c0_i32_0 : i32, i32
  }
  func.func @transform_5(%arg0: i32) -> (i32, i32) {
    %c0_i32 = arith.constant 0 : i32
    %c0_i32_0 = arith.constant 0 : i32
    %c0_i32_1 = arith.constant 0 : i32
    return %c0_i32, %c0_i32_0 : i32, i32
  }
  func.func @transform_6(%arg0: i32) -> (i32, i32) {
    %c0_i32 = arith.constant 0 : i32
    %c0_i32_0 = arith.constant 0 : i32
    %c0_i32_1 = arith.constant 0 : i32
    return %c0_i32, %c0_i32_0 : i32, i32
  }
  func.func @transform_7(%arg0: i32) -> (i32, i32) {
    %c0_i32 = arith.constant 0 : i32
    %c0_i32_0 = arith.constant 0 : i32
    %c0_i32_1 = arith.constant 0 : i32
    return %c0_i32, %c0_i32_0 : i32, i32
  }
  func.func @transform_8(%arg0: i32) -> (i32, i32) {
    %c0_i32 = arith.constant 0 : i32
    %c0_i32_0 = arith.constant 0 : i32
    %c0_i32_1 = arith.constant 0 : i32
    return %c0_i32, %c0_i32_0 : i32, i32
  }
  func.func @transform_9(%arg0: i32) -> (i32, i32) {
    %c0_i32 = arith.constant 0 : i32
    %c0_i32_0 = arith.constant 0 : i32
    %c0_i32_1 = arith.constant 0 : i32
    return %c0_i32, %c0_i32_0 : i32, i32
  }
  func.func @transform_10(%arg0: i32) -> (i32, i32) {
    %c0_i32 = arith.constant 0 : i32
    %c0_i32_0 = arith.constant 0 : i32
    %c0_i32_1 = arith.constant 0 : i32
    return %c0_i32, %c0_i32_0 : i32, i32
  }
  func.func @transform_11(%arg0: i32) -> (i32, i32) {
    %c0_i32 = arith.constant 0 : i32
    %c0_i32_0 = arith.constant 0 : i32
    %c0_i32_1 = arith.constant 0 : i32
    return %c0_i32, %c0_i32_0 : i32, i32
  }
  func.func @transform_12(%arg0: i32) -> (i32, i32) {
    %c0_i32 = arith.constant 0 : i32
    %c0_i32_0 = arith.constant 0 : i32
    %c0_i32_1 = arith.constant 0 : i32
    return %c0_i32, %c0_i32_0 : i32, i32
  }
  func.func @transform_13(%arg0: i32) -> (i32, i32) {
    %c0_i32 = arith.constant 0 : i32
    %c0_i32_0 = arith.constant 0 : i32
    return %arg0, %c0_i32 : i32, i32
  }
  func.func @transform_14(%arg0: i32) -> (i32, i32) {
    %c0_i32 = arith.constant 0 : i32
    %c0_i32_0 = arith.constant 0 : i32
    return %arg0, %c0_i32 : i32, i32
  }
}

</mosaic_0001>

<llo_original>
// kernel: autoencoder_forward_padded.1
$region0: #{autoencoder_forward_padded.1}
  #allocation0 [shape = 'u32[]', space=smem, size = 0x4, offset = 0x4, fixed_abs, tag = 'smem constant byte address 0x4 - core index']
  #allocation1 [shape = 'u32[72,128]{1,0:T(1,128)}', space=vmem, size = 0x9000, scoped, tag = 'internal scratch']
  %s0 = inlined_call_operand.hbm [shape: bf16[256,128], index: 0, kind: input, shape index: {}]
  %s1 = inlined_call_operand.hbm [shape: bf16[128,128], index: 1, kind: input, shape index: {}]
  %s2 = inlined_call_operand.hbm [shape: f32[1,128], index: 2, kind: input, shape index: {}]
  %s3 = inlined_call_operand.hbm [shape: bf16[128,128], index: 3, kind: input, shape index: {}]
  %s4 = inlined_call_operand.vmem [shape: f32[1,128], index: 4, kind: input, shape index: {}]
  %s5 = inlined_call_operand.hbm [shape: bf16[128,128], index: 5, kind: input, shape index: {}]
  %s6 = inlined_call_operand.vmem [shape: f32[1,128], index: 6, kind: input, shape index: {}]
  %s7 = inlined_call_operand.hbm [shape: bf16[128,128], index: 7, kind: input, shape index: {}]
  %s8 = inlined_call_operand.hbm [shape: f32[1,128], index: 8, kind: input, shape index: {}]
  %s9 = inlined_call_operand.hbm [shape: bf16[128,128], index: 9, kind: input, shape index: {}]
  %s10 = inlined_call_operand.vmem [shape: f32[1,128], index: 10, kind: input, shape index: {}]
  %s11 = inlined_call_operand.hbm [shape: bf16[128,128], index: 11, kind: input, shape index: {}]
  %s12 = inlined_call_operand.vmem [shape: f32[1,128], index: 12, kind: input, shape index: {}]
  %s13 = inlined_call_operand.hbm [shape: bf16[256,128], index: 13, kind: output, shape index: {0}]
  %s14 = inlined_call_operand.hbm [shape: bf16[256,128], index: 14, kind: output, shape index: {1}]
  %15 = xla_tuple %s13, %s14
  %s16 = sld [smem:[#allocation0]]
  $region106: #{autoencoder_forward_padded.1} parent=0
    _
  %s18 = ssub.s32 1, %s16
  %s19 = scalar_select 0, %s18, %s16
  $region1: #{autoencoder_forward_padded.1} parent=0
    #allocation2 [shape = 'u8[65536]{0}', space=vmem, size = 0x10000, scoped, tag = 'input window, operand 0, single buffered']
    #allocation3 [shape = 's32[1]{0}', space=sflag, size = 0x4, scoped, tag = 'scoped memory for autoencoder_forward_padded.1']
    #allocation4 [shape = 's32[1]{0}', space=sflag, size = 0x4, scoped, tag = 'scoped memory for autoencoder_forward_padded.1']
    #allocation5 [shape = 'u8[32768]{0}', space=vmem, size = 0x8000, scoped, tag = 'input window, operand 1, single buffered']
    #allocation6 [shape = 's32[1]{0}', space=sflag, size = 0x4, scoped, tag = 'scoped memory for autoencoder_forward_padded.1']
    #allocation7 [shape = 'u8[512]{0}', space=vmem, size = 0x400, scoped, tag = 'input window, operand 2, single buffered']
    #allocation8 [shape = 'u8[32768]{0}', space=vmem, size = 0x8000, scoped, tag = 'input window, operand 3, single buffered']
    #allocation9 [shape = 's32[1]{0}', space=sflag, size = 0x4, scoped, tag = 'scoped memory for autoencoder_forward_padded.1']
    #allocation10 [shape = 'u8[32768]{0}', space=vmem, size = 0x8000, scoped, tag = 'input window, operand 5, single buffered']
    #allocation11 [shape = 'u8[32768]{0}', space=vmem, size = 0x8000, scoped, tag = 'input window, operand 7, single buffered']
    #allocation12 [shape = 's32[1]{0}', space=sflag, size = 0x4, scoped, tag = 'scoped memory for autoencoder_forward_padded.1']
    #allocation13 [shape = 'u8[512]{0}', space=vmem, size = 0x400, scoped, tag = 'input window, operand 8, single buffered']
    #allocation14 [shape = 'u8[32768]{0}', space=vmem, size = 0x8000, scoped, tag = 'input window, operand 9, single buffered']
    #allocation15 [shape = 's32[1]{0}', space=sflag, size = 0x4, scoped, tag = 'scoped memory for autoencoder_forward_padded.1']
    #allocation16 [shape = 'u8[32768]{0}', space=vmem, size = 0x8000, scoped, tag = 'input window, operand 11, single buffered']
    #allocation17 [shape = 'u8[65536]{0}', space=vmem, size = 0x10000, scoped, tag = 'output window, operand 0, single buffered']
    #allocation18 [shape = 'u8[65536]{0}', space=vmem, size = 0x10000, scoped, tag = 'output window, operand 1, single buffered']
    #allocation19 [shape = 's32[1]{0}', space=sflag, size = 0x4, scoped, tag = 'scoped memory for autoencoder_forward_padded.1']
    %20 = vsyncpa [#allocation3], 0
    %21 = vsyncpa [#allocation6], 0
    %22 = vsyncpa [#allocation9], 0
    %23 = vsyncpa [#allocation12], 0
    %24 = vsyncpa [#allocation15], 0
    %25 = vsyncpa [#allocation4], 0
    %26 = vsyncpa [#allocation19], 0
    // Predicated region
    $region2: #{autoencoder_forward_padded.1} parent=1 // pred_check
      _
    $region3: #{autoencoder_forward_padded.1} parent=1 // pred_check_branch
      %28 = sbr.rel (0) target = $region5
    $region4: #{autoencoder_forward_padded.1} parent=1 // pred_region
      %30 = vsyncadd [#allocation3], 0
      %s31 = sshll.u32 %s0, 4
      %s32 = int_to_ptr.hbm [resolvable:$true] %s31
      %s33 = sshll.u32 [#allocation2], 4
      %s34 = int_to_ptr.vmem [resolvable:$true] %s33
      %39 = dma.hbm_to_vmem [thread:$0]  %s32, 2048, %s34, [#allocation3], 64, 64, 4
    $region5: #{autoencoder_forward_padded.1} parent=1 // pred_fallthru
      _
    // Predicated region
    $region6: #{autoencoder_forward_padded.1} parent=1 // pred_check
      _
    $region7: #{autoencoder_forward_padded.1} parent=1 // pred_check_branch
      %41 = sbr.rel (0) target = $region9
    $region8: #{autoencoder_forward_padded.1} parent=1 // pred_region
      %43 = vsyncadd [#allocation6], 0
      %s44 = sshll.u32 %s1, 4
      %s45 = int_to_ptr.hbm [resolvable:$true] %s44
      %s46 = sshll.u32 [#allocation5], 4
      %s47 = int_to_ptr.vmem [resolvable:$true] %s46
      %52 = dma.hbm_to_vmem [thread:$0]  %s45, 1024, %s47, [#allocation6], 64, 64, 4
    $region9: #{autoencoder_forward_padded.1} parent=1 // pred_fallthru
      _
    // Predicated region
    $region10: #{autoencoder_forward_padded.1} parent=1 // pred_check
      _
    $region11: #{autoencoder_forward_padded.1} parent=1 // pred_check_branch
      %54 = sbr.rel (0) target = $region13
    $region12: #{autoencoder_forward_padded.1} parent=1 // pred_region
      %56 = vsyncadd [#allocation6], 0
      %s58 = sshll.u32 %s2, 4
      %s59 = int_to_ptr.hbm [resolvable:$true] %s58
      %s60 = sshll.u32 [#allocation7], 4
      %s61 = int_to_ptr.vmem [resolvable:$true] %s60
      %63 = dma.hbm_to_vmem [thread:$0]  %s59, 16, %s61, [#allocation6]
    $region13: #{autoencoder_forward_padded.1} parent=1 // pred_fallthru
      _
    // Predicated region
    $region14: #{autoencoder_forward_padded.1} parent=1 // pred_check
      _
    $region15: #{autoencoder_forward_padded.1} parent=1 // pred_check_branch
      %65 = sbr.rel (0) target = $region17
    $region16: #{autoencoder_forward_padded.1} parent=1 // pred_region
      %67 = vsyncadd [#allocation9], 0
      %s68 = sshll.u32 %s3, 4
      %s69 = int_to_ptr.hbm [resolvable:$true] %s68
      %s70 = sshll.u32 [#allocation8], 4
      %s71 = int_to_ptr.vmem [resolvable:$true] %s70
      %76 = dma.hbm_to_vmem [thread:$0]  %s69, 1024, %s71, [#allocation9], 64, 64, 4
    $region17: #{autoencoder_forward_padded.1} parent=1 // pred_fallthru
      _
    // Predicated region
    $region18: #{autoencoder_forward_padded.1} parent=1 // pred_check
      _
    $region19: #{autoencoder_forward_padded.1} parent=1 // pred_check_branch
      %78 = sbr.rel (0) target = $region21
    $region20: #{autoencoder_forward_padded.1} parent=1 // pred_region
      _
    $region21: #{autoencoder_forward_padded.1} parent=1 // pred_fallthru
      _
    // Predicated region
    $region22: #{autoencoder_forward_padded.1} parent=1 // pred_check
      _
    $region23: #{autoencoder_forward_padded.1} parent=1 // pred_check_branch
      %80 = sbr.rel (0) target = $region25
    $region24: #{autoencoder_forward_padded.1} parent=1 // pred_region
      %82 = vsyncadd [#allocation9], 0
      %s83 = sshll.u32 %s5, 4
      %s84 = int_to_ptr.hbm [resolvable:$true] %s83
      %s85 = sshll.u32 [#allocation10], 4
      %s86 = int_to_ptr.vmem [resolvable:$true] %s85
      %91 = dma.hbm_to_vmem [thread:$0]  %s84, 1024, %s86, [#allocation9], 64, 64, 4
    $region25: #{autoencoder_forward_padded.1} parent=1 // pred_fallthru
      _
    // Predicated region
    $region26: #{autoencoder_forward_padded.1} parent=1 // pred_check
      _
    $region27: #{autoencoder_forward_padded.1} parent=1 // pred_check_branch
      %93 = sbr.rel (0) target = $region29
    $region28: #{autoencoder_forward_padded.1} parent=1 // pred_region
      _
    $region29: #{autoencoder_forward_padded.1} parent=1 // pred_fallthru
      _
    // Predicated region
    $region30: #{autoencoder_forward_padded.1} parent=1 // pred_check
      _
    $region31: #{autoencoder_forward_padded.1} parent=1 // pred_check_branch
      %95 = sbr.rel (0) target = $region33
    $region32: #{autoencoder_forward_padded.1} parent=1 // pred_region
      %97 = vsyncadd [#allocation12], 0
      %s98 = sshll.u32 %s7, 4
      %s99 = int_to_ptr.hbm [resolvable:$true] %s98
      %s100 = sshll.u32 [#allocation11], 4
      %s101 = int_to_ptr.vmem [resolvable:$true] %s100
      %106 = dma.hbm_to_vmem [thread:$0]  %s99, 1024, %s101, [#allocation12], 64, 64, 4
    $region33: #{autoencoder_forward_padded.1} parent=1 // pred_fallthru
      _
    // Predicated region
    $region34: #{autoencoder_forward_padded.1} parent=1 // pred_check
      _
    $region35: #{autoencoder_forward_padded.1} parent=1 // pred_check_branch
      %108 = sbr.rel (0) target = $region37
    $region36: #{autoencoder_forward_padded.1} parent=1 // pred_region
      %110 = vsyncadd [#allocation12], 0
      %s112 = sshll.u32 %s8, 4
      %s113 = int_to_ptr.hbm [resolvable:$true] %s112
      %s114 = sshll.u32 [#allocation13], 4
      %s115 = int_to_ptr.vmem [resolvable:$true] %s114
      %117 = dma.hbm_to_vmem [thread:$0]  %s113, 16, %s115, [#allocation12]
    $region37: #{autoencoder_forward_padded.1} parent=1 // pred_fallthru
      _
    // Predicated region
    $region38: #{autoencoder_forward_padded.1} parent=1 // pred_check
      _
    $region39: #{autoencoder_forward_padded.1} parent=1 // pred_check_branch
      %119 = sbr.rel (0) target = $region41
    $region40: #{autoencoder_forward_padded.1} parent=1 // pred_region
      %121 = vsyncadd [#allocation15], 0
      %s122 = sshll.u32 %s9, 4
      %s123 = int_to_ptr.hbm [resolvable:$true] %s122
      %s124 = sshll.u32 [#allocation14], 4
      %s125 = int_to_ptr.vmem [resolvable:$true] %s124
      %130 = dma.hbm_to_vmem [thread:$0]  %s123, 1024, %s125, [#allocation15], 64, 64, 4
    $region41: #{autoencoder_forward_padded.1} parent=1 // pred_fallthru
      _
    // Predicated region
    $region42: #{autoencoder_forward_padded.1} parent=1 // pred_check
      _
    $region43: #{autoencoder_forward_padded.1} parent=1 // pred_check_branch
      %132 = sbr.rel (0) target = $region45
    $region44: #{autoencoder_forward_padded.1} parent=1 // pred_region
      _
    $region45: #{autoencoder_forward_padded.1} parent=1 // pred_fallthru
      _
    // Predicated region
    $region46: #{autoencoder_forward_padded.1} parent=1 // pred_check
      _
    $region47: #{autoencoder_forward_padded.1} parent=1 // pred_check_branch
      %134 = sbr.rel (0) target = $region49
    $region48: #{autoencoder_forward_padded.1} parent=1 // pred_region
      %136 = vsyncadd [#allocation15], 0
      %s137 = sshll.u32 %s11, 4
      %s138 = int_to_ptr.hbm [resolvable:$true] %s137
      %s139 = sshll.u32 [#allocation16], 4
      %s140 = int_to_ptr.vmem [resolvable:$true] %s139
      %145 = dma.hbm_to_vmem [thread:$0]  %s138, 1024, %s140, [#allocation15], 64, 64, 4
    $region49: #{autoencoder_forward_padded.1} parent=1 // pred_fallthru
      _
    // Predicated region
    $region50: #{autoencoder_forward_padded.1} parent=1 // pred_check
      _
    $region51: #{autoencoder_forward_padded.1} parent=1 // pred_check_branch
      %147 = sbr.rel (0) target = $region53
    $region52: #{autoencoder_forward_padded.1} parent=1 // pred_region
      _
    $region53: #{autoencoder_forward_padded.1} parent=1 // pred_fallthru
      _
    // Predicated region
    $region54: #{autoencoder_forward_padded.1} parent=1 // pred_check
      _
    $region55: #{autoencoder_forward_padded.1} parent=1 // pred_check_branch
      %149 = sbr.rel (0) target = $region57
    $region56: #{autoencoder_forward_padded.1} parent=1 // pred_region
      %151 = dma.done [#allocation3], 2048
    $region57: #{autoencoder_forward_padded.1} parent=1 // pred_fallthru
      _
    // Predicated region
    $region58: #{autoencoder_forward_padded.1} parent=1 // pred_check
      _
    $region59: #{autoencoder_forward_padded.1} parent=1 // pred_check_branch
      %153 = sbr.rel (0) target = $region61
    $region60: #{autoencoder_forward_padded.1} parent=1 // pred_region
      %155 = dma.done [#allocation6], 1024
    $region61: #{autoencoder_forward_padded.1} parent=1 // pred_fallthru
      _
    // Predicated region
    $region62: #{autoencoder_forward_padded.1} parent=1 // pred_check
      _
    $region63: #{autoencoder_forward_padded.1} parent=1 // pred_check_branch
      %157 = sbr.rel (0) target = $region65
    $region64: #{autoencoder_forward_padded.1} parent=1 // pred_region
      %159 = dma.done [#allocation6], 16
    $region65: #{autoencoder_forward_padded.1} parent=1 // pred_fallthru
      _
    // Predicated region
    $region66: #{autoencoder_forward_padded.1} parent=1 // pred_check
      _
    $region67: #{autoencoder_forward_padded.1} parent=1 // pred_check_branch
      %161 = sbr.rel (0) target = $region69
    $region68: #{autoencoder_forward_padded.1} parent=1 // pred_region
      %163 = dma.done [#allocation9], 1024
    $region69: #{autoencoder_forward_padded.1} parent=1 // pred_fallthru
      _
    // Predicated region
    $region70: #{autoencoder_forward_padded.1} parent=1 // pred_check
      _
    $region71: #{autoencoder_forward_padded.1} parent=1 // pred_check_branch
      %165 = sbr.rel (0) target = $region73
    $region72: #{autoencoder_forward_padded.1} parent=1 // pred_region
      %167 = dma.done [#allocation9], 1024
    $region73: #{autoencoder_forward_padded.1} parent=1 // pred_fallthru
      _
    // Predicated region
    $region74: #{autoencoder_forward_padded.1} parent=1 // pred_check
      _
    $region75: #{autoencoder_forward_padded.1} parent=1 // pred_check_branch
      %169 = sbr.rel (0) target = $region77
    $region76: #{autoencoder_forward_padded.1} parent=1 // pred_region
      %171 = dma.done [#allocation12], 1024
    $region77: #{autoencoder_forward_padded.1} parent=1 // pred_fallthru
      _
    // Predicated region
    $region78: #{autoencoder_forward_padded.1} parent=1 // pred_check
      _
    $region79: #{autoencoder_forward_padded.1} parent=1 // pred_check_branch
      %173 = sbr.rel (0) target = $region81
    $region80: #{autoencoder_forward_padded.1} parent=1 // pred_region
      %175 = dma.done [#allocation12], 16
    $region81: #{autoencoder_forward_padded.1} parent=1 // pred_fallthru
      _
    // Predicated region
    $region82: #{autoencoder_forward_padded.1} parent=1 // pred_check
      _
    $region83: #{autoencoder_forward_padded.1} parent=1 // pred_check_branch
      %177 = sbr.rel (0) target = $region85
    $region84: #{autoencoder_forward_padded.1} parent=1 // pred_region
      %179 = dma.done [#allocation15], 1024
    $region85: #{autoencoder_forward_padded.1} parent=1 // pred_fallthru
      _
    // Predicated region
    $region86: #{autoencoder_forward_padded.1} parent=1 // pred_check
      _
    $region87: #{autoencoder_forward_padded.1} parent=1 // pred_check_branch
      %181 = sbr.rel (0) target = $region89
    $region88: #{autoencoder_forward_padded.1} parent=1 // pred_region
      %183 = dma.done [#allocation15], 1024
    $region89: #{autoencoder_forward_padded.1} parent=1 // pred_fallthru
      _
    %v184 = vld [vmem:[#allocation2] sm:$0xf]
    %v185 = vld [vmem:[#allocation2 + $0x4] sm:$0xf]
    %v186 = vld [vmem:[#allocation2 + $0x8] sm:$0xf]
    %v187 = vld [vmem:[#allocation2 + $0xc] sm:$0xf]
    %v188 = vld [vmem:[#allocation2 + $0x10] sm:$0xf]
    %v189 = vld [vmem:[#allocation2 + $0x14] sm:$0xf]
    %v190 = vld [vmem:[#allocation2 + $0x18] sm:$0xf]
    %v191 = vld [vmem:[#allocation2 + $0x1c] sm:$0xf]
    %v192 = vld [vmem:[#allocation2 + $0x20] sm:$0xf]
    %v193 = vld [vmem:[#allocation2 + $0x24] sm:$0xf]
    %v194 = vld [vmem:[#allocation2 + $0x28] sm:$0xf]
    %v195 = vld [vmem:[#allocation2 + $0x2c] sm:$0xf]
    %v196 = vld [vmem:[#allocation2 + $0x30] sm:$0xf]
    %v197 = vld [vmem:[#allocation2 + $0x34] sm:$0xf]
    %v198 = vld [vmem:[#allocation2 + $0x38] sm:$0xf]
    %v199 = vld [vmem:[#allocation2 + $0x3c] sm:$0xf]
    %v200 = vld [vmem:[#allocation2 + $0x40] sm:$0xf]
    %v201 = vld [vmem:[#allocation2 + $0x44] sm:$0xf]
    %v202 = vld [vmem:[#allocation2 + $0x48] sm:$0xf]
    %v203 = vld [vmem:[#allocation2 + $0x4c] sm:$0xf]
    %v204 = vld [vmem:[#allocation2 + $0x50] sm:$0xf]
    %v205 = vld [vmem:[#allocation2 + $0x54] sm:$0xf]
    %v206 = vld [vmem:[#allocation2 + $0x58] sm:$0xf]
    %v207 = vld [vmem:[#allocation2 + $0x5c] sm:$0xf]
    %v208 = vld [vmem:[#allocation2 + $0x60] sm:$0xf]
    %v209 = vld [vmem:[#allocation2 + $0x64] sm:$0xf]
    %v210 = vld [vmem:[#allocation2 + $0x68] sm:$0xf]
    %v211 = vld [vmem:[#allocation2 + $0x6c] sm:$0xf]
    %v212 = vld [vmem:[#allocation2 + $0x70] sm:$0xf]
    %v213 = vld [vmem:[#allocation2 + $0x74] sm:$0xf]
    %v214 = vld [vmem:[#allocation2 + $0x78] sm:$0xf]
    %v215 = vld [vmem:[#allocation2 + $0x7c] sm:$0xf]
    %v216 = vld [vmem:[#allocation5] sm:$0xf]
    %v217 = vld [vmem:[#allocation5 + $0x4] sm:$0xf]
    %v218 = vld [vmem:[#allocation5 + $0x8] sm:$0xf]
    %v219 = vld [vmem:[#allocation5 + $0xc] sm:$0xf]
    %v220 = vld [vmem:[#allocation5 + $0x10] sm:$0xf]
    %v221 = vld [vmem:[#allocation5 + $0x14] sm:$0xf]
    %v222 = vld [vmem:[#allocation5 + $0x18] sm:$0xf]
    %v223 = vld [vmem:[#allocation5 + $0x1c] sm:$0xf]
    %v224 = vld [vmem:[#allocation5 + $0x20] sm:$0xf]
    %v225 = vld [vmem:[#allocation5 + $0x24] sm:$0xf]
    %v226 = vld [vmem:[#allocation5 + $0x28] sm:$0xf]
    %v227 = vld [vmem:[#allocation5 + $0x2c] sm:$0xf]
    %v228 = vld [vmem:[#allocation5 + $0x30] sm:$0xf]
    %v229 = vld [vmem:[#allocation5 + $0x34] sm:$0xf]
    %v230 = vld [vmem:[#allocation5 + $0x38] sm:$0xf]
    %v231 = vld [vmem:[#allocation5 + $0x3c] sm:$0xf]
    %v232 = vld [vmem:[#allocation7] sm:$0x1]
    %v234 = vperm.slane %v232, 0
    %v268 = vunpack.c.l.b16 %v184
    %v269 = vunpack.c.l.b16 %v185
    %v270 = vunpack.c.l.b16 %v186
    %v271 = vunpack.c.l.b16 %v187
    %v272 = vunpack.c.l.b16 %v188
    %v273 = vunpack.c.l.b16 %v189
    %v274 = vunpack.c.l.b16 %v190
    %v275 = vunpack.c.l.b16 %v191
    %v276 = vunpack.c.l.b16 %v192
    %v277 = vunpack.c.l.b16 %v193
    %v278 = vunpack.c.l.b16 %v194
    %v279 = vunpack.c.l.b16 %v195
    %v280 = vunpack.c.l.b16 %v196
    %v281 = vunpack.c.l.b16 %v197
    %v282 = vunpack.c.l.b16 %v198
    %v283 = vunpack.c.l.b16 %v199
    %v284 = vunpack.c.l.b16 %v200
    %v285 = vunpack.c.l.b16 %v201
    %v286 = vunpack.c.l.b16 %v202
    %v287 = vunpack.c.l.b16 %v203
    %v288 = vunpack.c.l.b16 %v204
    %v289 = vunpack.c.l.b16 %v205
    %v290 = vunpack.c.l.b16 %v206
    %v291 = vunpack.c.l.b16 %v207
    %v292 = vunpack.c.l.b16 %v208
    %v293 = vunpack.c.l.b16 %v209
    %v294 = vunpack.c.l.b16 %v210
    %v295 = vunpack.c.l.b16 %v211
    %v296 = vunpack.c.l.b16 %v212
    %v297 = vunpack.c.l.b16 %v213
    %v298 = vunpack.c.l.b16 %v214
    %v299 = vunpack.c.l.b16 %v215
    %v300 = vpack.c.b16 %v269, %v268
    %v301 = vpack.c.b16 %v271, %v270
    %v302 = vpack.c.b16 %v273, %v272
    %v303 = vpack.c.b16 %v275, %v274
    %v304 = vpack.c.b16 %v277, %v276
    %v305 = vpack.c.b16 %v279, %v278
    %v306 = vpack.c.b16 %v281, %v280
    %v307 = vpack.c.b16 %v283, %v282
    %v308 = vpack.c.b16 %v285, %v284
    %v309 = vpack.c.b16 %v287, %v286
    %v310 = vpack.c.b16 %v289, %v288
    %v311 = vpack.c.b16 %v291, %v290
    %v312 = vpack.c.b16 %v293, %v292
    %v313 = vpack.c.b16 %v295, %v294
    %v314 = vpack.c.b16 %v297, %v296
    %v315 = vpack.c.b16 %v299, %v298
    %v348 = vunpack.c.l.b16 %v216
    %v349 = vunpack.c.l.b16 %v217
    %v350 = vunpack.c.l.b16 %v218
    %v351 = vunpack.c.l.b16 %v219
    %v352 = vunpack.c.l.b16 %v220
    %v353 = vunpack.c.l.b16 %v221
    %v354 = vunpack.c.l.b16 %v222
    %v355 = vunpack.c.l.b16 %v223
    %v356 = vunpack.c.l.b16 %v224
    %v357 = vunpack.c.l.b16 %v225
    %v358 = vunpack.c.l.b16 %v226
    %v359 = vunpack.c.l.b16 %v227
    %v360 = vunpack.c.l.b16 %v228
    %v361 = vunpack.c.l.b16 %v229
    %v362 = vunpack.c.l.b16 %v230
    %v363 = vunpack.c.l.b16 %v231
    %v364 = vpack.c.b16 %v349, %v348
    %v365 = vpack.c.b16 %v351, %v350
    %v366 = vpack.c.b16 %v353, %v352
    %v367 = vpack.c.b16 %v355, %v354
    %v368 = vpack.c.b16 %v357, %v356
    %v369 = vpack.c.b16 %v359, %v358
    %v370 = vpack.c.b16 %v361, %v360
    %v371 = vpack.c.b16 %v363, %v362
    %380 = vmatpush.bf16.msra.mxu0 %v371
    %381 = vmatpush.bf16.msra.mxu0 %v370
    %382 = vmatpush.bf16.msra.mxu0 %v369
    %383 = vmatpush.bf16.msra.mxu0 %v368
    %384 = vmatpush.bf16.msra.mxu0 %v367
    %385 = vmatpush.bf16.msra.mxu0 %v366
    %386 = vmatpush.bf16.msra.mxu0 %v365
    %387 = vmatpush.bf16.msra.mxu0 %v364
    %388 = vmatmul.bf16.gmra.mxu0 %v300
    %v389 = vpop.f32.mrf.mxu0
    %v390 = vadd.f32 %v234, %v389
    %v391 = vpop.f32.mrf.mxu0
    %v392 = vadd.f32 %v234, %v391
    %393 = vmatmul.bf16.gmra.mxu0 %v301
    %v394 = vpop.f32.mrf.mxu0
    %v395 = vadd.f32 %v234, %v394
    %v396 = vpop.f32.mrf.mxu0
    %v397 = vadd.f32 %v234, %v396
    %398 = vmatmul.bf16.gmra.mxu0 %v302
    %v399 = vpop.f32.mrf.mxu0
    %v400 = vadd.f32 %v234, %v399
    %v401 = vpop.f32.mrf.mxu0
    %v402 = vadd.f32 %v234, %v401
    %403 = vmatmul.bf16.gmra.mxu0 %v303
    %v404 = vpop.f32.mrf.mxu0
    %v405 = vadd.f32 %v234, %v404
    %v406 = vpop.f32.mrf.mxu0
    %v407 = vadd.f32 %v234, %v406
    %408 = vmatmul.bf16.gmra.mxu0 %v304
    %v409 = vpop.f32.mrf.mxu0
    %v410 = vadd.f32 %v234, %v409
    %v411 = vpop.f32.mrf.mxu0
    %v412 = vadd.f32 %v234, %v411
    %413 = vmatmul.bf16.gmra.mxu0 %v305
    %v414 = vpop.f32.mrf.mxu0
    %v415 = vadd.f32 %v234, %v414
    %v416 = vpop.f32.mrf.mxu0
    %v417 = vadd.f32 %v234, %v416
    %418 = vmatmul.bf16.gmra.mxu0 %v306
    %v419 = vpop.f32.mrf.mxu0
    %v420 = vadd.f32 %v234, %v419
    %v421 = vpop.f32.mrf.mxu0
    %v422 = vadd.f32 %v234, %v421
    %423 = vmatmul.bf16.gmra.mxu0 %v307
    %v424 = vpop.f32.mrf.mxu0
    %v425 = vadd.f32 %v234, %v424
    %v426 = vpop.f32.mrf.mxu0
    %v427 = vadd.f32 %v234, %v426
    %428 = vmatmul.bf16.gmra.mxu0 %v308
    %v429 = vpop.f32.mrf.mxu0
    %v430 = vadd.f32 %v234, %v429
    %v431 = vpop.f32.mrf.mxu0
    %v432 = vadd.f32 %v234, %v431
    %433 = vmatmul.bf16.gmra.mxu0 %v309
    %v434 = vpop.f32.mrf.mxu0
    %v435 = vadd.f32 %v234, %v434
    %v436 = vpop.f32.mrf.mxu0
    %v437 = vadd.f32 %v234, %v436
    %438 = vmatmul.bf16.gmra.mxu0 %v310
    %v439 = vpop.f32.mrf.mxu0
    %v440 = vadd.f32 %v234, %v439
    %v441 = vpop.f32.mrf.mxu0
    %v442 = vadd.f32 %v234, %v441
    %443 = vmatmul.bf16.gmra.mxu0 %v311
    %v444 = vpop.f32.mrf.mxu0
    %v445 = vadd.f32 %v234, %v444
    %v446 = vpop.f32.mrf.mxu0
    %v447 = vadd.f32 %v234, %v446
    %448 = vmatmul.bf16.gmra.mxu0 %v312
    %v449 = vpop.f32.mrf.mxu0
    %v450 = vadd.f32 %v234, %v449
    %v451 = vpop.f32.mrf.mxu0
    %v452 = vadd.f32 %v234, %v451
    %453 = vmatmul.bf16.gmra.mxu0 %v313
    %v454 = vpop.f32.mrf.mxu0
    %v455 = vadd.f32 %v234, %v454
    %v456 = vpop.f32.mrf.mxu0
    %v457 = vadd.f32 %v234, %v456
    %458 = vmatmul.bf16.gmra.mxu0 %v314
    %v459 = vpop.f32.mrf.mxu0
    %v460 = vadd.f32 %v234, %v459
    %v461 = vpop.f32.mrf.mxu0
    %v462 = vadd.f32 %v234, %v461
    %463 = vmatmul.bf16.gmra.mxu0 %v315
    %v464 = vpop.f32.mrf.mxu0
    %v465 = vadd.f32 %v234, %v464
    %v466 = vpop.f32.mrf.mxu0
    %v467 = vadd.f32 %v234, %v466
    %468 = vdwg.mxu0
    %v469 = vmax.f32 %v390, 0.0
    %v470 = vmax.f32 %v392, 0.0
    %v471 = vmax.f32 %v395, 0.0
    %v472 = vmax.f32 %v397, 0.0
    %v473 = vmax.f32 %v400, 0.0
    %v474 = vmax.f32 %v402, 0.0
    %v475 = vmax.f32 %v405, 0.0
    %v476 = vmax.f32 %v407, 0.0
    %v477 = vmax.f32 %v410, 0.0
    %v478 = vmax.f32 %v412, 0.0
    %v479 = vmax.f32 %v415, 0.0
    %v480 = vmax.f32 %v417, 0.0
    %v481 = vmax.f32 %v420, 0.0
    %v482 = vmax.f32 %v422, 0.0
    %v483 = vmax.f32 %v425, 0.0
    %v484 = vmax.f32 %v427, 0.0
    %v485 = vmax.f32 %v430, 0.0
    %v486 = vmax.f32 %v432, 0.0
    %v487 = vmax.f32 %v435, 0.0
    %v488 = vmax.f32 %v437, 0.0
    %v489 = vmax.f32 %v440, 0.0
    %v490 = vmax.f32 %v442, 0.0
    %v491 = vmax.f32 %v445, 0.0
    %v492 = vmax.f32 %v447, 0.0
    %v493 = vmax.f32 %v450, 0.0
    %v494 = vmax.f32 %v452, 0.0
    %v495 = vmax.f32 %v455, 0.0
    %v496 = vmax.f32 %v457, 0.0
    %v497 = vmax.f32 %v460, 0.0
    %v498 = vmax.f32 %v462, 0.0
    %v499 = vmax.f32 %v465, 0.0
    %v500 = vmax.f32 %v467, 0.0
    %v501 = vpack.c.bf16 %v470, %v469
    %v502 = vpack.c.bf16 %v472, %v471
    %v503 = vpack.c.bf16 %v474, %v473
    %v504 = vpack.c.bf16 %v476, %v475
    %v505 = vpack.c.bf16 %v478, %v477
    %v506 = vpack.c.bf16 %v480, %v479
    %v507 = vpack.c.bf16 %v482, %v481
    %v508 = vpack.c.bf16 %v484, %v483
    %v509 = vpack.c.bf16 %v486, %v485
    %v510 = vpack.c.bf16 %v488, %v487
    %v511 = vpack.c.bf16 %v490, %v489
    %v512 = vpack.c.bf16 %v492, %v491
    %v513 = vpack.c.bf16 %v494, %v493
    %v514 = vpack.c.bf16 %v496, %v495
    %v515 = vpack.c.bf16 %v498, %v497
    %v516 = vpack.c.bf16 %v500, %v499
    %v517 = vld [vmem:[#allocation8] sm:$0xf]
    %v518 = vld [vmem:[#allocation8 + $0x4] sm:$0xf]
    %v519 = vld [vmem:[#allocation8 + $0x8] sm:$0xf]
    %v520 = vld [vmem:[#allocation8 + $0xc] sm:$0xf]
    %v521 = vld [vmem:[#allocation8 + $0x10] sm:$0xf]
    %v522 = vld [vmem:[#allocation8 + $0x14] sm:$0xf]
    %v523 = vld [vmem:[#allocation8 + $0x18] sm:$0xf]
    %v524 = vld [vmem:[#allocation8 + $0x1c] sm:$0xf]
    %v525 = vld [vmem:[#allocation8 + $0x20] sm:$0xf]
    %v526 = vld [vmem:[#allocation8 + $0x24] sm:$0xf]
    %v527 = vld [vmem:[#allocation8 + $0x28] sm:$0xf]
    %v528 = vld [vmem:[#allocation8 + $0x2c] sm:$0xf]
    %v529 = vld [vmem:[#allocation8 + $0x30] sm:$0xf]
    %v530 = vld [vmem:[#allocation8 + $0x34] sm:$0xf]
    %v531 = vld [vmem:[#allocation8 + $0x38] sm:$0xf]
    %v532 = vld [vmem:[#allocation8 + $0x3c] sm:$0xf]
    %v533 = vld [vmem:[%s4] sm:$0x1]
    %v535 = vperm.slane %v533, 0
    %v553 = vunpack.c.l.b16 %v517
    %v554 = vunpack.c.l.b16 %v518
    %v555 = vunpack.c.l.b16 %v519
    %v556 = vunpack.c.l.b16 %v520
    %v557 = vunpack.c.l.b16 %v521
    %v558 = vunpack.c.l.b16 %v522
    %v559 = vunpack.c.l.b16 %v523
    %v560 = vunpack.c.l.b16 %v524
    %v561 = vunpack.c.l.b16 %v525
    %v562 = vunpack.c.l.b16 %v526
    %v563 = vunpack.c.l.b16 %v527
    %v564 = vunpack.c.l.b16 %v528
    %v565 = vunpack.c.l.b16 %v529
    %v566 = vunpack.c.l.b16 %v530
    %v567 = vunpack.c.l.b16 %v531
    %v568 = vunpack.c.l.b16 %v532
    %v569 = vpack.c.b16 %v554, %v553
    %v570 = vpack.c.b16 %v556, %v555
    %v571 = vpack.c.b16 %v558, %v557
    %v572 = vpack.c.b16 %v560, %v559
    %v573 = vpack.c.b16 %v562, %v561
    %v574 = vpack.c.b16 %v564, %v563
    %v575 = vpack.c.b16 %v566, %v565
    %v576 = vpack.c.b16 %v568, %v567
    %585 = vmatpush.bf16.msra.mxu0 %v576
    %586 = vmatpush.bf16.msra.mxu0 %v575
    %587 = vmatpush.bf16.msra.mxu0 %v574
    %588 = vmatpush.bf16.msra.mxu0 %v573
    %589 = vmatpush.bf16.msra.mxu0 %v572
    %590 = vmatpush.bf16.msra.mxu0 %v571
    %591 = vmatpush.bf16.msra.mxu0 %v570
    %592 = vmatpush.bf16.msra.mxu0 %v569
    %593 = vmatmul.bf16.gmra.mxu0 %v501
    %v594 = vpop.f32.mrf.mxu0
    %v595 = vadd.f32 %v535, %v594
    %v596 = vpop.f32.mrf.mxu0
    %v597 = vadd.f32 %v535, %v596
    %598 = vmatmul.bf16.gmra.mxu0 %v502
    %v599 = vpop.f32.mrf.mxu0
    %v600 = vadd.f32 %v535, %v599
    %v601 = vpop.f32.mrf.mxu0
    %v602 = vadd.f32 %v535, %v601
    %603 = vmatmul.bf16.gmra.mxu0 %v503
    %v604 = vpop.f32.mrf.mxu0
    %v605 = vadd.f32 %v535, %v604
    %v606 = vpop.f32.mrf.mxu0
    %v607 = vadd.f32 %v535, %v606
    %608 = vmatmul.bf16.gmra.mxu0 %v504
    %v609 = vpop.f32.mrf.mxu0
    %v610 = vadd.f32 %v535, %v609
    %v611 = vpop.f32.mrf.mxu0
    %v612 = vadd.f32 %v535, %v611
    %613 = vmatmul.bf16.gmra.mxu0 %v505
    %v614 = vpop.f32.mrf.mxu0
    %v615 = vadd.f32 %v535, %v614
    %v616 = vpop.f32.mrf.mxu0
    %v617 = vadd.f32 %v535, %v616
    %618 = vmatmul.bf16.gmra.mxu0 %v506
    %v619 = vpop.f32.mrf.mxu0
    %v620 = vadd.f32 %v535, %v619
    %v621 = vpop.f32.mrf.mxu0
    %v622 = vadd.f32 %v535, %v621
    %623 = vmatmul.bf16.gmra.mxu0 %v507
    %v624 = vpop.f32.mrf.mxu0
    %v625 = vadd.f32 %v535, %v624
    %v626 = vpop.f32.mrf.mxu0
    %v627 = vadd.f32 %v535, %v626
    %628 = vmatmul.bf16.gmra.mxu0 %v508
    %v629 = vpop.f32.mrf.mxu0
    %v630 = vadd.f32 %v535, %v629
    %v631 = vpop.f32.mrf.mxu0
    %v632 = vadd.f32 %v535, %v631
    %633 = vmatmul.bf16.gmra.mxu0 %v509
    %v634 = vpop.f32.mrf.mxu0
    %v635 = vadd.f32 %v535, %v634
    %v636 = vpop.f32.mrf.mxu0
    %v637 = vadd.f32 %v535, %v636
    %638 = vmatmul.bf16.gmra.mxu0 %v510
    %v639 = vpop.f32.mrf.mxu0
    %v640 = vadd.f32 %v535, %v639
    %v641 = vpop.f32.mrf.mxu0
    %v642 = vadd.f32 %v535, %v641
    %643 = vmatmul.bf16.gmra.mxu0 %v511
    %v644 = vpop.f32.mrf.mxu0
    %v645 = vadd.f32 %v535, %v644
    %v646 = vpop.f32.mrf.mxu0
    %v647 = vadd.f32 %v535, %v646
    %648 = vmatmul.bf16.gmra.mxu0 %v512
    %v649 = vpop.f32.mrf.mxu0
    %v650 = vadd.f32 %v535, %v649
    %v651 = vpop.f32.mrf.mxu0
    %v652 = vadd.f32 %v535, %v651
    %653 = vmatmul.bf16.gmra.mxu0 %v513
    %v654 = vpop.f32.mrf.mxu0
    %v655 = vadd.f32 %v535, %v654
    %v656 = vpop.f32.mrf.mxu0
    %v657 = vadd.f32 %v535, %v656
    %658 = vmatmul.bf16.gmra.mxu0 %v514
    %v659 = vpop.f32.mrf.mxu0
    %v660 = vadd.f32 %v535, %v659
    %v661 = vpop.f32.mrf.mxu0
    %v662 = vadd.f32 %v535, %v661
    %663 = vmatmul.bf16.gmra.mxu0 %v515
    %v664 = vpop.f32.mrf.mxu0
    %v665 = vadd.f32 %v535, %v664
    %v666 = vpop.f32.mrf.mxu0
    %v667 = vadd.f32 %v535, %v666
    %668 = vmatmul.bf16.gmra.mxu0 %v516
    %v669 = vpop.f32.mrf.mxu0
    %v670 = vadd.f32 %v535, %v669
    %v671 = vpop.f32.mrf.mxu0
    %v672 = vadd.f32 %v535, %v671
    %673 = vdwg.mxu0
    %v674 = vmax.f32 %v595, 0.0
    %v675 = vmax.f32 %v597, 0.0
    %v676 = vmax.f32 %v600, 0.0
    %v677 = vmax.f32 %v602, 0.0
    %v678 = vmax.f32 %v605, 0.0
    %v679 = vmax.f32 %v607, 0.0
    %v680 = vmax.f32 %v610, 0.0
    %v681 = vmax.f32 %v612, 0.0
    %v682 = vmax.f32 %v615, 0.0
    %v683 = vmax.f32 %v617, 0.0
    %v684 = vmax.f32 %v620, 0.0
    %v685 = vmax.f32 %v622, 0.0
    %v686 = vmax.f32 %v625, 0.0
    %v687 = vmax.f32 %v627, 0.0
    %v688 = vmax.f32 %v630, 0.0
    %v689 = vmax.f32 %v632, 0.0
    %v690 = vmax.f32 %v635, 0.0
    %v691 = vmax.f32 %v637, 0.0
    %v692 = vmax.f32 %v640, 0.0
    %v693 = vmax.f32 %v642, 0.0
    %v694 = vmax.f32 %v645, 0.0
    %v695 = vmax.f32 %v647, 0.0
    %v696 = vmax.f32 %v650, 0.0
    %v697 = vmax.f32 %v652, 0.0
    %v698 = vmax.f32 %v655, 0.0
    %v699 = vmax.f32 %v657, 0.0
    %v700 = vmax.f32 %v660, 0.0
    %v701 = vmax.f32 %v662, 0.0
    %v702 = vmax.f32 %v665, 0.0
    %v703 = vmax.f32 %v667, 0.0
    %v704 = vmax.f32 %v670, 0.0
    %v705 = vmax.f32 %v672, 0.0
    %v706 = vpack.c.bf16 %v675, %v674
    %v707 = vpack.c.bf16 %v677, %v676
    %v708 = vpack.c.bf16 %v679, %v678
    %v709 = vpack.c.bf16 %v681, %v680
    %v710 = vpack.c.bf16 %v683, %v682
    %v711 = vpack.c.bf16 %v685, %v684
    %v712 = vpack.c.bf16 %v687, %v686
    %v713 = vpack.c.bf16 %v689, %v688
    %v714 = vpack.c.bf16 %v691, %v690
    %v715 = vpack.c.bf16 %v693, %v692
    %v716 = vpack.c.bf16 %v695, %v694
    %v717 = vpack.c.bf16 %v697, %v696
    %v718 = vpack.c.bf16 %v699, %v698
    %v719 = vpack.c.bf16 %v701, %v700
    %v720 = vpack.c.bf16 %v703, %v702
    %v721 = vpack.c.bf16 %v705, %v704
    %v722 = vld [vmem:[#allocation10] sm:$0xf]
    %v723 = vld [vmem:[#allocation10 + $0x4] sm:$0xf]
    %v724 = vld [vmem:[#allocation10 + $0x8] sm:$0xf]
    %v725 = vld [vmem:[#allocation10 + $0xc] sm:$0xf]
    %v726 = vld [vmem:[#allocation10 + $0x10] sm:$0xf]
    %v727 = vld [vmem:[#allocation10 + $0x14] sm:$0xf]
    %v728 = vld [vmem:[#allocation10 + $0x18] sm:$0xf]
    %v729 = vld [vmem:[#allocation10 + $0x1c] sm:$0xf]
    %v730 = vld [vmem:[#allocation10 + $0x20] sm:$0xf]
    %v731 = vld [vmem:[#allocation10 + $0x24] sm:$0xf]
    %v732 = vld [vmem:[#allocation10 + $0x28] sm:$0xf]
    %v733 = vld [vmem:[#allocation10 + $0x2c] sm:$0xf]
    %v734 = vld [vmem:[#allocation10 + $0x30] sm:$0xf]
    %v735 = vld [vmem:[#allocation10 + $0x34] sm:$0xf]
    %v736 = vld [vmem:[#allocation10 + $0x38] sm:$0xf]
    %v737 = vld [vmem:[#allocation10 + $0x3c] sm:$0xf]
    %v738 = vld [vmem:[%s6] sm:$0x1]
    %v740 = vperm.slane %v738, 0
    %v758 = vunpack.c.l.b16 %v722
    %v759 = vunpack.c.l.b16 %v723
    %v760 = vunpack.c.l.b16 %v724
    %v761 = vunpack.c.l.b16 %v725
    %v762 = vunpack.c.l.b16 %v726
    %v763 = vunpack.c.l.b16 %v727
    %v764 = vunpack.c.l.b16 %v728
    %v765 = vunpack.c.l.b16 %v729
    %v766 = vunpack.c.l.b16 %v730
    %v767 = vunpack.c.l.b16 %v731
    %v768 = vunpack.c.l.b16 %v732
    %v769 = vunpack.c.l.b16 %v733
    %v770 = vunpack.c.l.b16 %v734
    %v771 = vunpack.c.l.b16 %v735
    %v772 = vunpack.c.l.b16 %v736
    %v773 = vunpack.c.l.b16 %v737
    %v774 = vpack.c.b16 %v759, %v758
    %v775 = vpack.c.b16 %v761, %v760
    %v776 = vpack.c.b16 %v763, %v762
    %v777 = vpack.c.b16 %v765, %v764
    %v778 = vpack.c.b16 %v767, %v766
    %v779 = vpack.c.b16 %v769, %v768
    %v780 = vpack.c.b16 %v771, %v770
    %v781 = vpack.c.b16 %v773, %v772
    %790 = vmatpush.bf16.msra.mxu0 %v781
    %791 = vmatpush.bf16.msra.mxu0 %v780
    %792 = vmatpush.bf16.msra.mxu0 %v779
    %793 = vmatpush.bf16.msra.mxu0 %v778
    %794 = vmatpush.bf16.msra.mxu0 %v777
    %795 = vmatpush.bf16.msra.mxu0 %v776
    %796 = vmatpush.bf16.msra.mxu0 %v775
    %797 = vmatpush.bf16.msra.mxu0 %v774
    %798 = vmatmul.bf16.gmra.mxu0 %v706
    %v799 = vpop.f32.mrf.mxu0
    %v800 = vadd.f32 %v740, %v799
    %v801 = vpop.f32.mrf.mxu0
    %v802 = vadd.f32 %v740, %v801
    %803 = vmatmul.bf16.gmra.mxu0 %v707
    %v804 = vpop.f32.mrf.mxu0
    %v805 = vadd.f32 %v740, %v804
    %v806 = vpop.f32.mrf.mxu0
    %v807 = vadd.f32 %v740, %v806
    %808 = vmatmul.bf16.gmra.mxu0 %v708
    %v809 = vpop.f32.mrf.mxu0
    %v810 = vadd.f32 %v740, %v809
    %v811 = vpop.f32.mrf.mxu0
    %v812 = vadd.f32 %v740, %v811
    %813 = vmatmul.bf16.gmra.mxu0 %v709
    %v814 = vpop.f32.mrf.mxu0
    %v815 = vadd.f32 %v740, %v814
    %v816 = vpop.f32.mrf.mxu0
    %v817 = vadd.f32 %v740, %v816
    %818 = vmatmul.bf16.gmra.mxu0 %v710
    %v819 = vpop.f32.mrf.mxu0
    %v820 = vadd.f32 %v740, %v819
    %v821 = vpop.f32.mrf.mxu0
    %v822 = vadd.f32 %v740, %v821
    %823 = vmatmul.bf16.gmra.mxu0 %v711
    %v824 = vpop.f32.mrf.mxu0
    %v825 = vadd.f32 %v740, %v824
    %v826 = vpop.f32.mrf.mxu0
    %v827 = vadd.f32 %v740, %v826
    %828 = vmatmul.bf16.gmra.mxu0 %v712
    %v829 = vpop.f32.mrf.mxu0
    %v830 = vadd.f32 %v740, %v829
    %v831 = vpop.f32.mrf.mxu0
    %v832 = vadd.f32 %v740, %v831
    %833 = vmatmul.bf16.gmra.mxu0 %v713
    %v834 = vpop.f32.mrf.mxu0
    %v835 = vadd.f32 %v740, %v834
    %v836 = vpop.f32.mrf.mxu0
    %v837 = vadd.f32 %v740, %v836
    %838 = vmatmul.bf16.gmra.mxu0 %v714
    %v839 = vpop.f32.mrf.mxu0
    %v840 = vadd.f32 %v740, %v839
    %v841 = vpop.f32.mrf.mxu0
    %v842 = vadd.f32 %v740, %v841
    %843 = vmatmul.bf16.gmra.mxu0 %v715
    %v844 = vpop.f32.mrf.mxu0
    %v845 = vadd.f32 %v740, %v844
    %v846 = vpop.f32.mrf.mxu0
    %v847 = vadd.f32 %v740, %v846
    %848 = vmatmul.bf16.gmra.mxu0 %v716
    %v849 = vpop.f32.mrf.mxu0
    %v850 = vadd.f32 %v740, %v849
    %v851 = vpop.f32.mrf.mxu0
    %v852 = vadd.f32 %v740, %v851
    %853 = vmatmul.bf16.gmra.mxu0 %v717
    %v854 = vpop.f32.mrf.mxu0
    %v855 = vadd.f32 %v740, %v854
    %v856 = vpop.f32.mrf.mxu0
    %v857 = vadd.f32 %v740, %v856
    %858 = vmatmul.bf16.gmra.mxu0 %v718
    %v859 = vpop.f32.mrf.mxu0
    %v860 = vadd.f32 %v740, %v859
    %v861 = vpop.f32.mrf.mxu0
    %v862 = vadd.f32 %v740, %v861
    %863 = vmatmul.bf16.gmra.mxu0 %v719
    %v864 = vpop.f32.mrf.mxu0
    %v865 = vadd.f32 %v740, %v864
    %v866 = vpop.f32.mrf.mxu0
    %v867 = vadd.f32 %v740, %v866
    %868 = vmatmul.bf16.gmra.mxu0 %v720
    %v869 = vpop.f32.mrf.mxu0
    %v870 = vadd.f32 %v740, %v869
    %v871 = vpop.f32.mrf.mxu0
    %v872 = vadd.f32 %v740, %v871
    %873 = vmatmul.bf16.gmra.mxu0 %v721
    %v874 = vpop.f32.mrf.mxu0
    %v875 = vadd.f32 %v740, %v874
    %v876 = vpop.f32.mrf.mxu0
    %v877 = vadd.f32 %v740, %v876
    %878 = vdwg.mxu0
    %v879 = vmul.f32 %v800, %v800
    %v880 = vmul.f32 %v802, %v802
    %v881 = vmul.f32 %v805, %v805
    %v882 = vmul.f32 %v807, %v807
    %v883 = vmul.f32 %v810, %v810
    %v884 = vmul.f32 %v812, %v812
    %v885 = vmul.f32 %v815, %v815
    %v886 = vmul.f32 %v817, %v817
    %v887 = vmul.f32 %v820, %v820
    %v888 = vmul.f32 %v822, %v822
    %v889 = vmul.f32 %v825, %v825
    %v890 = vmul.f32 %v827, %v827
    %v891 = vmul.f32 %v830, %v830
    %v892 = vmul.f32 %v832, %v832
    %v893 = vmul.f32 %v835, %v835
    %v894 = vmul.f32 %v837, %v837
    %v895 = vmul.f32 %v840, %v840
    %v896 = vmul.f32 %v842, %v842
    %v897 = vmul.f32 %v845, %v845
    %v898 = vmul.f32 %v847, %v847
    %v899 = vmul.f32 %v850, %v850
    %v900 = vmul.f32 %v852, %v852
    %v901 = vmul.f32 %v855, %v855
    %v902 = vmul.f32 %v857, %v857
    %v903 = vmul.f32 %v860, %v860
    %v904 = vmul.f32 %v862, %v862
    %v905 = vmul.f32 %v865, %v865
    %v906 = vmul.f32 %v867, %v867
    %v907 = vmul.f32 %v870, %v870
    %v908 = vmul.f32 %v872, %v872
    %v909 = vmul.f32 %v875, %v875
    %v910 = vmul.f32 %v877, %v877
    %911 = vadd.xlane.f32.xlu0 %v879
    %v912 = vpop.xlane.xlu0 %911
    %913 = vadd.xlane.f32.xlu0 %v880
    %v914 = vpop.xlane.xlu0 %913
    %915 = vadd.xlane.f32.xlu0 %v881
    %v916 = vpop.xlane.xlu0 %915
    %917 = vadd.xlane.f32.xlu0 %v882
    %v918 = vpop.xlane.xlu0 %917
    %919 = vadd.xlane.f32.xlu0 %v883
    %v920 = vpop.xlane.xlu0 %919
    %921 = vadd.xlane.f32.xlu0 %v884
    %v922 = vpop.xlane.xlu0 %921
    %923 = vadd.xlane.f32.xlu0 %v885
    %v924 = vpop.xlane.xlu0 %923
    %925 = vadd.xlane.f32.xlu0 %v886
    %v926 = vpop.xlane.xlu0 %925
    %927 = vadd.xlane.f32.xlu0 %v887
    %v928 = vpop.xlane.xlu0 %927
    %929 = vadd.xlane.f32.xlu0 %v888
    %v930 = vpop.xlane.xlu0 %929
    %931 = vadd.xlane.f32.xlu0 %v889
    %v932 = vpop.xlane.xlu0 %931
    %933 = vadd.xlane.f32.xlu0 %v890
    %v934 = vpop.xlane.xlu0 %933
    %935 = vadd.xlane.f32.xlu0 %v891
    %v936 = vpop.xlane.xlu0 %935
    %937 = vadd.xlane.f32.xlu0 %v892
    %v938 = vpop.xlane.xlu0 %937
    %939 = vadd.xlane.f32.xlu0 %v893
    %v940 = vpop.xlane.xlu0 %939
    %941 = vadd.xlane.f32.xlu0 %v894
    %v942 = vpop.xlane.xlu0 %941
    %943 = vadd.xlane.f32.xlu0 %v895
    %v944 = vpop.xlane.xlu0 %943
    %945 = vadd.xlane.f32.xlu0 %v896
    %v946 = vpop.xlane.xlu0 %945
    %947 = vadd.xlane.f32.xlu0 %v897
    %v948 = vpop.xlane.xlu0 %947
    %949 = vadd.xlane.f32.xlu0 %v898
    %v950 = vpop.xlane.xlu0 %949
    %951 = vadd.xlane.f32.xlu0 %v899
    %v952 = vpop.xlane.xlu0 %951
    %953 = vadd.xlane.f32.xlu0 %v900
    %v954 = vpop.xlane.xlu0 %953
    %955 = vadd.xlane.f32.xlu0 %v901
    %v956 = vpop.xlane.xlu0 %955
    %957 = vadd.xlane.f32.xlu0 %v902
    %v958 = vpop.xlane.xlu0 %957
    %959 = vadd.xlane.f32.xlu0 %v903
    %v960 = vpop.xlane.xlu0 %959
    %961 = vadd.xlane.f32.xlu0 %v904
    %v962 = vpop.xlane.xlu0 %961
    %963 = vadd.xlane.f32.xlu0 %v905
    %v964 = vpop.xlane.xlu0 %963
    %965 = vadd.xlane.f32.xlu0 %v906
    %v966 = vpop.xlane.xlu0 %965
    %967 = vadd.xlane.f32.xlu0 %v907
    %v968 = vpop.xlane.xlu0 %967
    %969 = vadd.xlane.f32.xlu0 %v908
    %v970 = vpop.xlane.xlu0 %969
    %971 = vadd.xlane.f32.xlu0 %v909
    %v972 = vpop.xlane.xlu0 %971
    %973 = vadd.xlane.f32.xlu0 %v910
    %v974 = vpop.xlane.xlu0 %973
    %v975 = vmax.f32 %v912, 1e-24
    %v976 = vmax.f32 %v914, 1e-24
    %v977 = vmax.f32 %v916, 1e-24
    %v978 = vmax.f32 %v918, 1e-24
    %v979 = vmax.f32 %v920, 1e-24
    %v980 = vmax.f32 %v922, 1e-24
    %v981 = vmax.f32 %v924, 1e-24
    %v982 = vmax.f32 %v926, 1e-24
    %v983 = vmax.f32 %v928, 1e-24
    %v984 = vmax.f32 %v930, 1e-24
    %v985 = vmax.f32 %v932, 1e-24
    %v986 = vmax.f32 %v934, 1e-24
    %v987 = vmax.f32 %v936, 1e-24
    %v988 = vmax.f32 %v938, 1e-24
    %v989 = vmax.f32 %v940, 1e-24
    %v990 = vmax.f32 %v942, 1e-24
    %v991 = vmax.f32 %v944, 1e-24
    %v992 = vmax.f32 %v946, 1e-24
    %v993 = vmax.f32 %v948, 1e-24
    %v994 = vmax.f32 %v950, 1e-24
    %v995 = vmax.f32 %v952, 1e-24
    %v996 = vmax.f32 %v954, 1e-24
    %v997 = vmax.f32 %v956, 1e-24
    %v998 = vmax.f32 %v958, 1e-24
    %v999 = vmax.f32 %v960, 1e-24
    %v1000 = vmax.f32 %v962, 1e-24
    %v1001 = vmax.f32 %v964, 1e-24
    %v1002 = vmax.f32 %v966, 1e-24
    %v1003 = vmax.f32 %v968, 1e-24
    %v1004 = vmax.f32 %v970, 1e-24
    %v1005 = vmax.f32 %v972, 1e-24
    %v1006 = vmax.f32 %v974, 1e-24
    %v1007 = vrsqrt.pop %v975
    %v1008 = vmul.f32 %v1007, %v975
    %v1009 = vmul.f32 %v1008, %v1007
    %v1010 = vmul.f32 0.5, %v1009
    %v1011 = vsub.f32 1.5, %v1010
    %v1012 = vmul.f32 %v1007, %v1011
    %vm1013 = vweird.f32 %v975
    %vm1014 = vweird.f32 %v1007
    %vm1015 = vmor %vm1013, %vm1014
    %v1016 = vsel %vm1015, %v1007, %v1012
    %v1017 = vrsqrt.pop %v976
    %v1018 = vmul.f32 %v1017, %v976
    %v1019 = vmul.f32 %v1018, %v1017
    %v1020 = vmul.f32 0.5, %v1019
    %v1021 = vsub.f32 1.5, %v1020
    %v1022 = vmul.f32 %v1017, %v1021
    %vm1023 = vweird.f32 %v976
    %vm1024 = vweird.f32 %v1017
    %vm1025 = vmor %vm1023, %vm1024
    %v1026 = vsel %vm1025, %v1017, %v1022
    %v1027 = vrsqrt.pop %v977
    %v1028 = vmul.f32 %v1027, %v977
    %v1029 = vmul.f32 %v1028, %v1027
    %v1030 = vmul.f32 0.5, %v1029
    %v1031 = vsub.f32 1.5, %v1030
    %v1032 = vmul.f32 %v1027, %v1031
    %vm1033 = vweird.f32 %v977
    %vm1034 = vweird.f32 %v1027
    %vm1035 = vmor %vm1033, %vm1034
    %v1036 = vsel %vm1035, %v1027, %v1032
    %v1037 = vrsqrt.pop %v978
    %v1038 = vmul.f32 %v1037, %v978
    %v1039 = vmul.f32 %v1038, %v1037
    %v1040 = vmul.f32 0.5, %v1039
    %v1041 = vsub.f32 1.5, %v1040
    %v1042 = vmul.f32 %v1037, %v1041
    %vm1043 = vweird.f32 %v978
    %vm1044 = vweird.f32 %v1037
    %vm1045 = vmor %vm1043, %vm1044
    %v1046 = vsel %vm1045, %v1037, %v1042
    %v1047 = vrsqrt.pop %v979
    %v1048 = vmul.f32 %v1047, %v979
    %v1049 = vmul.f32 %v1048, %v1047
    %v1050 = vmul.f32 0.5, %v1049
    %v1051 = vsub.f32 1.5, %v1050
    %v1052 = vmul.f32 %v1047, %v1051
    %vm1053 = vweird.f32 %v979
    %vm1054 = vweird.f32 %v1047
    %vm1055 = vmor %vm1053, %vm1054
    %v1056 = vsel %vm1055, %v1047, %v1052
    %v1057 = vrsqrt.pop %v980
    %v1058 = vmul.f32 %v1057, %v980
    %v1059 = vmul.f32 %v1058, %v1057
    %v1060 = vmul.f32 0.5, %v1059
    %v1061 = vsub.f32 1.5, %v1060
    %v1062 = vmul.f32 %v1057, %v1061
    %vm1063 = vweird.f32 %v980
    %vm1064 = vweird.f32 %v1057
    %vm1065 = vmor %vm1063, %vm1064
    %v1066 = vsel %vm1065, %v1057, %v1062
    %v1067 = vrsqrt.pop %v981
    %v1068 = vmul.f32 %v1067, %v981
    %v1069 = vmul.f32 %v1068, %v1067
    %v1070 = vmul.f32 0.5, %v1069
    %v1071 = vsub.f32 1.5, %v1070
    %v1072 = vmul.f32 %v1067, %v1071
    %vm1073 = vweird.f32 %v981
    %vm1074 = vweird.f32 %v1067
    %vm1075 = vmor %vm1073, %vm1074
    %v1076 = vsel %vm1075, %v1067, %v1072
    %v1077 = vrsqrt.pop %v982
    %v1078 = vmul.f32 %v1077, %v982
    %v1079 = vmul.f32 %v1078, %v1077
    %v1080 = vmul.f32 0.5, %v1079
    %v1081 = vsub.f32 1.5, %v1080
    %v1082 = vmul.f32 %v1077, %v1081
    %vm1083 = vweird.f32 %v982
    %vm1084 = vweird.f32 %v1077
    %vm1085 = vmor %vm1083, %vm1084
    %v1086 = vsel %vm1085, %v1077, %v1082
    %v1087 = vrsqrt.pop %v983
    %v1088 = vmul.f32 %v1087, %v983
    %v1089 = vmul.f32 %v1088, %v1087
    %v1090 = vmul.f32 0.5, %v1089
    %v1091 = vsub.f32 1.5, %v1090
    %v1092 = vmul.f32 %v1087, %v1091
    %vm1093 = vweird.f32 %v983
    %vm1094 = vweird.f32 %v1087
    %vm1095 = vmor %vm1093, %vm1094
    %v1096 = vsel %vm1095, %v1087, %v1092
    %v1097 = vrsqrt.pop %v984
    %v1098 = vmul.f32 %v1097, %v984
    %v1099 = vmul.f32 %v1098, %v1097
    %v1100 = vmul.f32 0.5, %v1099
    %v1101 = vsub.f32 1.5, %v1100
    %v1102 = vmul.f32 %v1097, %v1101
    %vm1103 = vweird.f32 %v984
    %vm1104 = vweird.f32 %v1097
    %vm1105 = vmor %vm1103, %vm1104
    %v1106 = vsel %vm1105, %v1097, %v1102
    %v1107 = vrsqrt.pop %v985
    %v1108 = vmul.f32 %v1107, %v985
    %v1109 = vmul.f32 %v1108, %v1107
    %v1110 = vmul.f32 0.5, %v1109
    %v1111 = vsub.f32 1.5, %v1110
    %v1112 = vmul.f32 %v1107, %v1111
    %vm1113 = vweird.f32 %v985
    %vm1114 = vweird.f32 %v1107
    %vm1115 = vmor %vm1113, %vm1114
    %v1116 = vsel %vm1115, %v1107, %v1112
    %v1117 = vrsqrt.pop %v986
    %v1118 = vmul.f32 %v1117, %v986
    %v1119 = vmul.f32 %v1118, %v1117
    %v1120 = vmul.f32 0.5, %v1119
    %v1121 = vsub.f32 1.5, %v1120
    %v1122 = vmul.f32 %v1117, %v1121
    %vm1123 = vweird.f32 %v986
    %vm1124 = vweird.f32 %v1117
    %vm1125 = vmor %vm1123, %vm1124
    %v1126 = vsel %vm1125, %v1117, %v1122
    %v1127 = vrsqrt.pop %v987
    %v1128 = vmul.f32 %v1127, %v987
    %v1129 = vmul.f32 %v1128, %v1127
    %v1130 = vmul.f32 0.5, %v1129
    %v1131 = vsub.f32 1.5, %v1130
    %v1132 = vmul.f32 %v1127, %v1131
    %vm1133 = vweird.f32 %v987
    %vm1134 = vweird.f32 %v1127
    %vm1135 = vmor %vm1133, %vm1134
    %v1136 = vsel %vm1135, %v1127, %v1132
    %v1137 = vrsqrt.pop %v988
    %v1138 = vmul.f32 %v1137, %v988
    %v1139 = vmul.f32 %v1138, %v1137
    %v1140 = vmul.f32 0.5, %v1139
    %v1141 = vsub.f32 1.5, %v1140
    %v1142 = vmul.f32 %v1137, %v1141
    %vm1143 = vweird.f32 %v988
    %vm1144 = vweird.f32 %v1137
    %vm1145 = vmor %vm1143, %vm1144
    %v1146 = vsel %vm1145, %v1137, %v1142
    %v1147 = vrsqrt.pop %v989
    %v1148 = vmul.f32 %v1147, %v989
    %v1149 = vmul.f32 %v1148, %v1147
    %v1150 = vmul.f32 0.5, %v1149
    %v1151 = vsub.f32 1.5, %v1150
    %v1152 = vmul.f32 %v1147, %v1151
    %vm1153 = vweird.f32 %v989
    %vm1154 = vweird.f32 %v1147
    %vm1155 = vmor %vm1153, %vm1154
    %v1156 = vsel %vm1155, %v1147, %v1152
    %v1157 = vrsqrt.pop %v990
    %v1158 = vmul.f32 %v1157, %v990
    %v1159 = vmul.f32 %v1158, %v1157
    %v1160 = vmul.f32 0.5, %v1159
    %v1161 = vsub.f32 1.5, %v1160
    %v1162 = vmul.f32 %v1157, %v1161
    %vm1163 = vweird.f32 %v990
    %vm1164 = vweird.f32 %v1157
    %vm1165 = vmor %vm1163, %vm1164
    %v1166 = vsel %vm1165, %v1157, %v1162
    %v1167 = vrsqrt.pop %v991
    %v1168 = vmul.f32 %v1167, %v991
    %v1169 = vmul.f32 %v1168, %v1167
    %v1170 = vmul.f32 0.5, %v1169
    %v1171 = vsub.f32 1.5, %v1170
    %v1172 = vmul.f32 %v1167, %v1171
    %vm1173 = vweird.f32 %v991
    %vm1174 = vweird.f32 %v1167
    %vm1175 = vmor %vm1173, %vm1174
    %v1176 = vsel %vm1175, %v1167, %v1172
    %v1177 = vrsqrt.pop %v992
    %v1178 = vmul.f32 %v1177, %v992
    %v1179 = vmul.f32 %v1178, %v1177
    %v1180 = vmul.f32 0.5, %v1179
    %v1181 = vsub.f32 1.5, %v1180
    %v1182 = vmul.f32 %v1177, %v1181
    %vm1183 = vweird.f32 %v992
    %vm1184 = vweird.f32 %v1177
    %vm1185 = vmor %vm1183, %vm1184
    %v1186 = vsel %vm1185, %v1177, %v1182
    %v1187 = vrsqrt.pop %v993
    %v1188 = vmul.f32 %v1187, %v993
    %v1189 = vmul.f32 %v1188, %v1187
    %v1190 = vmul.f32 0.5, %v1189
    %v1191 = vsub.f32 1.5, %v1190
    %v1192 = vmul.f32 %v1187, %v1191
    %vm1193 = vweird.f32 %v993
    %vm1194 = vweird.f32 %v1187
    %vm1195 = vmor %vm1193, %vm1194
    %v1196 = vsel %vm1195, %v1187, %v1192
    %v1197 = vrsqrt.pop %v994
    %v1198 = vmul.f32 %v1197, %v994
    %v1199 = vmul.f32 %v1198, %v1197
    %v1200 = vmul.f32 0.5, %v1199
    %v1201 = vsub.f32 1.5, %v1200
    %v1202 = vmul.f32 %v1197, %v1201
    %vm1203 = vweird.f32 %v994
    %vm1204 = vweird.f32 %v1197
    %vm1205 = vmor %vm1203, %vm1204
    %v1206 = vsel %vm1205, %v1197, %v1202
    %v1207 = vrsqrt.pop %v995
    %v1208 = vmul.f32 %v1207, %v995
    %v1209 = vmul.f32 %v1208, %v1207
    %v1210 = vmul.f32 0.5, %v1209
    %v1211 = vsub.f32 1.5, %v1210
    %v1212 = vmul.f32 %v1207, %v1211
    %vm1213 = vweird.f32 %v995
    %vm1214 = vweird.f32 %v1207
    %vm1215 = vmor %vm1213, %vm1214
    %v1216 = vsel %vm1215, %v1207, %v1212
    %v1217 = vrsqrt.pop %v996
    %v1218 = vmul.f32 %v1217, %v996
    %v1219 = vmul.f32 %v1218, %v1217
    %v1220 = vmul.f32 0.5, %v1219
    %v1221 = vsub.f32 1.5, %v1220
    %v1222 = vmul.f32 %v1217, %v1221
    %vm1223 = vweird.f32 %v996
    %vm1224 = vweird.f32 %v1217
    %vm1225 = vmor %vm1223, %vm1224
    %v1226 = vsel %vm1225, %v1217, %v1222
    %v1227 = vrsqrt.pop %v997
    %v1228 = vmul.f32 %v1227, %v997
    %v1229 = vmul.f32 %v1228, %v1227
    %v1230 = vmul.f32 0.5, %v1229
    %v1231 = vsub.f32 1.5, %v1230
    %v1232 = vmul.f32 %v1227, %v1231
    %vm1233 = vweird.f32 %v997
    %vm1234 = vweird.f32 %v1227
    %vm1235 = vmor %vm1233, %vm1234
    %v1236 = vsel %vm1235, %v1227, %v1232
    %v1237 = vrsqrt.pop %v998
    %v1238 = vmul.f32 %v1237, %v998
    %v1239 = vmul.f32 %v1238, %v1237
    %v1240 = vmul.f32 0.5, %v1239
    %v1241 = vsub.f32 1.5, %v1240
    %v1242 = vmul.f32 %v1237, %v1241
    %vm1243 = vweird.f32 %v998
    %vm1244 = vweird.f32 %v1237
    %vm1245 = vmor %vm1243, %vm1244
    %v1246 = vsel %vm1245, %v1237, %v1242
    %v1247 = vrsqrt.pop %v999
    %v1248 = vmul.f32 %v1247, %v999
    %v1249 = vmul.f32 %v1248, %v1247
    %v1250 = vmul.f32 0.5, %v1249
    %v1251 = vsub.f32 1.5, %v1250
    %v1252 = vmul.f32 %v1247, %v1251
    %vm1253 = vweird.f32 %v999
    %vm1254 = vweird.f32 %v1247
    %vm1255 = vmor %vm1253, %vm1254
    %v1256 = vsel %vm1255, %v1247, %v1252
    %v1257 = vrsqrt.pop %v1000
    %v1258 = vmul.f32 %v1257, %v1000
    %v1259 = vmul.f32 %v1258, %v1257
    %v1260 = vmul.f32 0.5, %v1259
    %v1261 = vsub.f32 1.5, %v1260
    %v1262 = vmul.f32 %v1257, %v1261
    %vm1263 = vweird.f32 %v1000
    %vm1264 = vweird.f32 %v1257
    %vm1265 = vmor %vm1263, %vm1264
    %v1266 = vsel %vm1265, %v1257, %v1262
    %v1267 = vrsqrt.pop %v1001
    %v1268 = vmul.f32 %v1267, %v1001
    %v1269 = vmul.f32 %v1268, %v1267
    %v1270 = vmul.f32 0.5, %v1269
    %v1271 = vsub.f32 1.5, %v1270
    %v1272 = vmul.f32 %v1267, %v1271
    %vm1273 = vweird.f32 %v1001
    %vm1274 = vweird.f32 %v1267
    %vm1275 = vmor %vm1273, %vm1274
    %v1276 = vsel %vm1275, %v1267, %v1272
    %v1277 = vrsqrt.pop %v1002
    %v1278 = vmul.f32 %v1277, %v1002
    %v1279 = vmul.f32 %v1278, %v1277
    %v1280 = vmul.f32 0.5, %v1279
    %v1281 = vsub.f32 1.5, %v1280
    %v1282 = vmul.f32 %v1277, %v1281
    %vm1283 = vweird.f32 %v1002
    %vm1284 = vweird.f32 %v1277
    %vm1285 = vmor %vm1283, %vm1284
    %v1286 = vsel %vm1285, %v1277, %v1282
    %v1287 = vrsqrt.pop %v1003
    %v1288 = vmul.f32 %v1287, %v1003
    %v1289 = vmul.f32 %v1288, %v1287
    %v1290 = vmul.f32 0.5, %v1289
    %v1291 = vsub.f32 1.5, %v1290
    %v1292 = vmul.f32 %v1287, %v1291
    %vm1293 = vweird.f32 %v1003
    %vm1294 = vweird.f32 %v1287
    %vm1295 = vmor %vm1293, %vm1294
    %v1296 = vsel %vm1295, %v1287, %v1292
    %v1297 = vrsqrt.pop %v1004
    %v1298 = vmul.f32 %v1297, %v1004
    %v1299 = vmul.f32 %v1298, %v1297
    %v1300 = vmul.f32 0.5, %v1299
    %v1301 = vsub.f32 1.5, %v1300
    %v1302 = vmul.f32 %v1297, %v1301
    %vm1303 = vweird.f32 %v1004
    %vm1304 = vweird.f32 %v1297
    %vm1305 = vmor %vm1303, %vm1304
    %v1306 = vsel %vm1305, %v1297, %v1302
    %v1307 = vrsqrt.pop %v1005
    %v1308 = vmul.f32 %v1307, %v1005
    %v1309 = vmul.f32 %v1308, %v1307
    %v1310 = vmul.f32 0.5, %v1309
    %v1311 = vsub.f32 1.5, %v1310
    %v1312 = vmul.f32 %v1307, %v1311
    %vm1313 = vweird.f32 %v1005
    %vm1314 = vweird.f32 %v1307
    %vm1315 = vmor %vm1313, %vm1314
    %v1316 = vsel %vm1315, %v1307, %v1312
    %v1317 = vrsqrt.pop %v1006
    %v1318 = vmul.f32 %v1317, %v1006
    %v1319 = vmul.f32 %v1318, %v1317
    %v1320 = vmul.f32 0.5, %v1319
    %v1321 = vsub.f32 1.5, %v1320
    %v1322 = vmul.f32 %v1317, %v1321
    %vm1323 = vweird.f32 %v1006
    %vm1324 = vweird.f32 %v1317
    %vm1325 = vmor %vm1323, %vm1324
    %v1326 = vsel %vm1325, %v1317, %v1322
    %v1327 = vmul.f32 %v800, %v1016
    %v1328 = vmul.f32 %v802, %v1026
    %v1329 = vmul.f32 %v805, %v1036
    %v1330 = vmul.f32 %v807, %v1046
    %v1331 = vmul.f32 %v810, %v1056
    %v1332 = vmul.f32 %v812, %v1066
    %v1333 = vmul.f32 %v815, %v1076
    %v1334 = vmul.f32 %v817, %v1086
    %v1335 = vmul.f32 %v820, %v1096
    %v1336 = vmul.f32 %v822, %v1106
    %v1337 = vmul.f32 %v825, %v1116
    %v1338 = vmul.f32 %v827, %v1126
    %v1339 = vmul.f32 %v830, %v1136
    %v1340 = vmul.f32 %v832, %v1146
    %v1341 = vmul.f32 %v835, %v1156
    %v1342 = vmul.f32 %v837, %v1166
    %v1343 = vmul.f32 %v840, %v1176
    %v1344 = vmul.f32 %v842, %v1186
    %v1345 = vmul.f32 %v845, %v1196
    %v1346 = vmul.f32 %v847, %v1206
    %v1347 = vmul.f32 %v850, %v1216
    %v1348 = vmul.f32 %v852, %v1226
    %v1349 = vmul.f32 %v855, %v1236
    %v1350 = vmul.f32 %v857, %v1246
    %v1351 = vmul.f32 %v860, %v1256
    %v1352 = vmul.f32 %v862, %v1266
    %v1353 = vmul.f32 %v865, %v1276
    %v1354 = vmul.f32 %v867, %v1286
    %v1355 = vmul.f32 %v870, %v1296
    %v1356 = vmul.f32 %v872, %v1306
    %v1357 = vmul.f32 %v875, %v1316
    %v1358 = vmul.f32 %v877, %v1326
    %v1359 = vpack.c.bf16 %v1327, %v1327
    %v1360 = vpack.c.bf16 %v1328, %v1328
    %v1361 = vpack.c.bf16 %v1329, %v1329
    %v1362 = vpack.c.bf16 %v1330, %v1330
    %v1363 = vpack.c.bf16 %v1331, %v1331
    %v1364 = vpack.c.bf16 %v1332, %v1332
    %v1365 = vpack.c.bf16 %v1333, %v1333
    %v1366 = vpack.c.bf16 %v1334, %v1334
    %v1367 = vpack.c.bf16 %v1335, %v1335
    %v1368 = vpack.c.bf16 %v1336, %v1336
    %v1369 = vpack.c.bf16 %v1337, %v1337
    %v1370 = vpack.c.bf16 %v1338, %v1338
    %v1371 = vpack.c.bf16 %v1339, %v1339
    %v1372 = vpack.c.bf16 %v1340, %v1340
    %v1373 = vpack.c.bf16 %v1341, %v1341
    %v1374 = vpack.c.bf16 %v1342, %v1342
    %v1375 = vpack.c.bf16 %v1343, %v1343
    %v1376 = vpack.c.bf16 %v1344, %v1344
    %v1377 = vpack.c.bf16 %v1345, %v1345
    %v1378 = vpack.c.bf16 %v1346, %v1346
    %v1379 = vpack.c.bf16 %v1347, %v1347
    %v1380 = vpack.c.bf16 %v1348, %v1348
    %v1381 = vpack.c.bf16 %v1349, %v1349
    %v1382 = vpack.c.bf16 %v1350, %v1350
    %v1383 = vpack.c.bf16 %v1351, %v1351
    %v1384 = vpack.c.bf16 %v1352, %v1352
    %v1385 = vpack.c.bf16 %v1353, %v1353
    %v1386 = vpack.c.bf16 %v1354, %v1354
    %v1387 = vpack.c.bf16 %v1355, %v1355
    %v1388 = vpack.c.bf16 %v1356, %v1356
    %v1389 = vpack.c.bf16 %v1357, %v1357
    %v1390 = vpack.c.bf16 %v1358, %v1358
    %1391 = vst [vmem:[#allocation18] sm:$0xf] %v1359
    %1392 = vst [vmem:[#allocation18 + $0x4] sm:$0xf] %v1360
    %1393 = vst [vmem:[#allocation18 + $0x8] sm:$0xf] %v1361
    %1394 = vst [vmem:[#allocation18 + $0xc] sm:$0xf] %v1362
    %1395 = vst [vmem:[#allocation18 + $0x10] sm:$0xf] %v1363
    %1396 = vst [vmem:[#allocation18 + $0x14] sm:$0xf] %v1364
    %1397 = vst [vmem:[#allocation18 + $0x18] sm:$0xf] %v1365
    %1398 = vst [vmem:[#allocation18 + $0x1c] sm:$0xf] %v1366
    %1399 = vst [vmem:[#allocation18 + $0x20] sm:$0xf] %v1367
    %1400 = vst [vmem:[#allocation18 + $0x24] sm:$0xf] %v1368
    %1401 = vst [vmem:[#allocation18 + $0x28] sm:$0xf] %v1369
    %1402 = vst [vmem:[#allocation18 + $0x2c] sm:$0xf] %v1370
    %1403 = vst [vmem:[#allocation18 + $0x30] sm:$0xf] %v1371
    %1404 = vst [vmem:[#allocation18 + $0x34] sm:$0xf] %v1372
    %1405 = vst [vmem:[#allocation18 + $0x38] sm:$0xf] %v1373
    %1406 = vst [vmem:[#allocation18 + $0x3c] sm:$0xf] %v1374
    %1407 = vst [vmem:[#allocation18 + $0x40] sm:$0xf] %v1375
    %1408 = vst [vmem:[#allocation18 + $0x44] sm:$0xf] %v1376
    %1409 = vst [vmem:[#allocation18 + $0x48] sm:$0xf] %v1377
    %1410 = vst [vmem:[#allocation18 + $0x4c] sm:$0xf] %v1378
    %1411 = vst [vmem:[#allocation18 + $0x50] sm:$0xf] %v1379
    %1412 = vst [vmem:[#allocation18 + $0x54] sm:$0xf] %v1380
    %1413 = vst [vmem:[#allocation18 + $0x58] sm:$0xf] %v1381
    %1414 = vst [vmem:[#allocation18 + $0x5c] sm:$0xf] %v1382
    %1415 = vst [vmem:[#allocation18 + $0x60] sm:$0xf] %v1383
    %1416 = vst [vmem:[#allocation18 + $0x64] sm:$0xf] %v1384
    %1417 = vst [vmem:[#allocation18 + $0x68] sm:$0xf] %v1385
    %1418 = vst [vmem:[#allocation18 + $0x6c] sm:$0xf] %v1386
    %1419 = vst [vmem:[#allocation18 + $0x70] sm:$0xf] %v1387
    %1420 = vst [vmem:[#allocation18 + $0x74] sm:$0xf] %v1388
    %1421 = vst [vmem:[#allocation18 + $0x78] sm:$0xf] %v1389
    %1422 = vst [vmem:[#allocation18 + $0x7c] sm:$0xf] %v1390
    %v1423 = vld [vmem:[#allocation11] sm:$0xf]
    %v1424 = vld [vmem:[#allocation11 + $0x4] sm:$0xf]
    %v1425 = vld [vmem:[#allocation11 + $0x8] sm:$0xf]
    %v1426 = vld [vmem:[#allocation11 + $0xc] sm:$0xf]
    %v1427 = vld [vmem:[#allocation11 + $0x10] sm:$0xf]
    %v1428 = vld [vmem:[#allocation11 + $0x14] sm:$0xf]
    %v1429 = vld [vmem:[#allocation11 + $0x18] sm:$0xf]
    %v1430 = vld [vmem:[#allocation11 + $0x1c] sm:$0xf]
    %v1431 = vld [vmem:[#allocation11 + $0x20] sm:$0xf]
    %v1432 = vld [vmem:[#allocation11 + $0x24] sm:$0xf]
    %v1433 = vld [vmem:[#allocation11 + $0x28] sm:$0xf]
    %v1434 = vld [vmem:[#allocation11 + $0x2c] sm:$0xf]
    %v1435 = vld [vmem:[#allocation11 + $0x30] sm:$0xf]
    %v1436 = vld [vmem:[#allocation11 + $0x34] sm:$0xf]
    %v1437 = vld [vmem:[#allocation11 + $0x38] sm:$0xf]
    %v1438 = vld [vmem:[#allocation11 + $0x3c] sm:$0xf]
    %v1439 = vld [vmem:[#allocation13] sm:$0x1]
    %v1441 = vperm.slane %v1439, 0
    %v1475 = vunpack.c.l.b16 %v1359
    %v1476 = vunpack.c.l.b16 %v1360
    %v1477 = vunpack.c.l.b16 %v1361
    %v1478 = vunpack.c.l.b16 %v1362
    %v1479 = vunpack.c.l.b16 %v1363
    %v1480 = vunpack.c.l.b16 %v1364
    %v1481 = vunpack.c.l.b16 %v1365
    %v1482 = vunpack.c.l.b16 %v1366
    %v1483 = vunpack.c.l.b16 %v1367
    %v1484 = vunpack.c.l.b16 %v1368
    %v1485 = vunpack.c.l.b16 %v1369
    %v1486 = vunpack.c.l.b16 %v1370
    %v1487 = vunpack.c.l.b16 %v1371
    %v1488 = vunpack.c.l.b16 %v1372
    %v1489 = vunpack.c.l.b16 %v1373
    %v1490 = vunpack.c.l.b16 %v1374
    %v1491 = vunpack.c.l.b16 %v1375
    %v1492 = vunpack.c.l.b16 %v1376
    %v1493 = vunpack.c.l.b16 %v1377
    %v1494 = vunpack.c.l.b16 %v1378
    %v1495 = vunpack.c.l.b16 %v1379
    %v1496 = vunpack.c.l.b16 %v1380
    %v1497 = vunpack.c.l.b16 %v1381
    %v1498 = vunpack.c.l.b16 %v1382
    %v1499 = vunpack.c.l.b16 %v1383
    %v1500 = vunpack.c.l.b16 %v1384
    %v1501 = vunpack.c.l.b16 %v1385
    %v1502 = vunpack.c.l.b16 %v1386
    %v1503 = vunpack.c.l.b16 %v1387
    %v1504 = vunpack.c.l.b16 %v1388
    %v1505 = vunpack.c.l.b16 %v1389
    %v1506 = vunpack.c.l.b16 %v1390
    %v1507 = vpack.c.b16 %v1476, %v1475
    %v1508 = vpack.c.b16 %v1478, %v1477
    %v1509 = vpack.c.b16 %v1480, %v1479
    %v1510 = vpack.c.b16 %v1482, %v1481
    %v1511 = vpack.c.b16 %v1484, %v1483
    %v1512 = vpack.c.b16 %v1486, %v1485
    %v1513 = vpack.c.b16 %v1488, %v1487
    %v1514 = vpack.c.b16 %v1490, %v1489
    %v1515 = vpack.c.b16 %v1492, %v1491
    %v1516 = vpack.c.b16 %v1494, %v1493
    %v1517 = vpack.c.b16 %v1496, %v1495
    %v1518 = vpack.c.b16 %v1498, %v1497
    %v1519 = vpack.c.b16 %v1500, %v1499
    %v1520 = vpack.c.b16 %v1502, %v1501
    %v1521 = vpack.c.b16 %v1504, %v1503
    %v1522 = vpack.c.b16 %v1506, %v1505
    %v1555 = vunpack.c.l.b16 %v1423
    %v1556 = vunpack.c.l.b16 %v1424
    %v1557 = vunpack.c.l.b16 %v1425
    %v1558 = vunpack.c.l.b16 %v1426
    %v1559 = vunpack.c.l.b16 %v1427
    %v1560 = vunpack.c.l.b16 %v1428
    %v1561 = vunpack.c.l.b16 %v1429
    %v1562 = vunpack.c.l.b16 %v1430
    %v1563 = vunpack.c.l.b16 %v1431
    %v1564 = vunpack.c.l.b16 %v1432
    %v1565 = vunpack.c.l.b16 %v1433
    %v1566 = vunpack.c.l.b16 %v1434
    %v1567 = vunpack.c.l.b16 %v1435
    %v1568 = vunpack.c.l.b16 %v1436
    %v1569 = vunpack.c.l.b16 %v1437
    %v1570 = vunpack.c.l.b16 %v1438
    %v1571 = vpack.c.b16 %v1556, %v1555
    %v1572 = vpack.c.b16 %v1558, %v1557
    %v1573 = vpack.c.b16 %v1560, %v1559
    %v1574 = vpack.c.b16 %v1562, %v1561
    %v1575 = vpack.c.b16 %v1564, %v1563
    %v1576 = vpack.c.b16 %v1566, %v1565
    %v1577 = vpack.c.b16 %v1568, %v1567
    %v1578 = vpack.c.b16 %v1570, %v1569
    %1587 = vmatpush.bf16.msra.mxu0 %v1578
    %1588 = vmatpush.bf16.msra.mxu0 %v1577
    %1589 = vmatpush.bf16.msra.mxu0 %v1576
    %1590 = vmatpush.bf16.msra.mxu0 %v1575
    %1591 = vmatpush.bf16.msra.mxu0 %v1574
    %1592 = vmatpush.bf16.msra.mxu0 %v1573
    %1593 = vmatpush.bf16.msra.mxu0 %v1572
    %1594 = vmatpush.bf16.msra.mxu0 %v1571
    %1595 = vmatmul.bf16.gmra.mxu0 %v1507
    %v1596 = vpop.f32.mrf.mxu0
    %v1597 = vadd.f32 %v1441, %v1596
    %v1598 = vpop.f32.mrf.mxu0
    %v1599 = vadd.f32 %v1441, %v1598
    %1600 = vmatmul.bf16.gmra.mxu0 %v1508
    %v1601 = vpop.f32.mrf.mxu0
    %v1602 = vadd.f32 %v1441, %v1601
    %v1603 = vpop.f32.mrf.mxu0
    %v1604 = vadd.f32 %v1441, %v1603
    %1605 = vmatmul.bf16.gmra.mxu0 %v1509
    %v1606 = vpop.f32.mrf.mxu0
    %v1607 = vadd.f32 %v1441, %v1606
    %v1608 = vpop.f32.mrf.mxu0
    %v1609 = vadd.f32 %v1441, %v1608
    %1610 = vmatmul.bf16.gmra.mxu0 %v1510
    %v1611 = vpop.f32.mrf.mxu0
    %v1612 = vadd.f32 %v1441, %v1611
    %v1613 = vpop.f32.mrf.mxu0
    %v1614 = vadd.f32 %v1441, %v1613
    %1615 = vmatmul.bf16.gmra.mxu0 %v1511
    %v1616 = vpop.f32.mrf.mxu0
    %v1617 = vadd.f32 %v1441, %v1616
    %v1618 = vpop.f32.mrf.mxu0
    %v1619 = vadd.f32 %v1441, %v1618
    %1620 = vmatmul.bf16.gmra.mxu0 %v1512
    %v1621 = vpop.f32.mrf.mxu0
    %v1622 = vadd.f32 %v1441, %v1621
    %v1623 = vpop.f32.mrf.mxu0
    %v1624 = vadd.f32 %v1441, %v1623
    %1625 = vmatmul.bf16.gmra.mxu0 %v1513
    %v1626 = vpop.f32.mrf.mxu0
    %v1627 = vadd.f32 %v1441, %v1626
    %v1628 = vpop.f32.mrf.mxu0
    %v1629 = vadd.f32 %v1441, %v1628
    %1630 = vmatmul.bf16.gmra.mxu0 %v1514
    %v1631 = vpop.f32.mrf.mxu0
    %v1632 = vadd.f32 %v1441, %v1631
    %v1633 = vpop.f32.mrf.mxu0
    %v1634 = vadd.f32 %v1441, %v1633
    %1635 = vmatmul.bf16.gmra.mxu0 %v1515
    %v1636 = vpop.f32.mrf.mxu0
    %v1637 = vadd.f32 %v1441, %v1636
    %v1638 = vpop.f32.mrf.mxu0
    %v1639 = vadd.f32 %v1441, %v1638
    %1640 = vmatmul.bf16.gmra.mxu0 %v1516
    %v1641 = vpop.f32.mrf.mxu0
    %v1642 = vadd.f32 %v1441, %v1641
    %v1643 = vpop.f32.mrf.mxu0
    %v1644 = vadd.f32 %v1441, %v1643
    %1645 = vmatmul.bf16.gmra.mxu0 %v1517
    %v1646 = vpop.f32.mrf.mxu0
    %v1647 = vadd.f32 %v1441, %v1646
    %v1648 = vpop.f32.mrf.mxu0
    %v1649 = vadd.f32 %v1441, %v1648
    %1650 = vmatmul.bf16.gmra.mxu0 %v1518
    %v1651 = vpop.f32.mrf.mxu0
    %v1652 = vadd.f32 %v1441, %v1651
    %v1653 = vpop.f32.mrf.mxu0
    %v1654 = vadd.f32 %v1441, %v1653
    %1655 = vmatmul.bf16.gmra.mxu0 %v1519
    %v1656 = vpop.f32.mrf.mxu0
    %v1657 = vadd.f32 %v1441, %v1656
    %v1658 = vpop.f32.mrf.mxu0
    %v1659 = vadd.f32 %v1441, %v1658
    %1660 = vmatmul.bf16.gmra.mxu0 %v1520
    %v1661 = vpop.f32.mrf.mxu0
    %v1662 = vadd.f32 %v1441, %v1661
    %v1663 = vpop.f32.mrf.mxu0
    %v1664 = vadd.f32 %v1441, %v1663
    %1665 = vmatmul.bf16.gmra.mxu0 %v1521
    %v1666 = vpop.f32.mrf.mxu0
    %v1667 = vadd.f32 %v1441, %v1666
    %v1668 = vpop.f32.mrf.mxu0
    %v1669 = vadd.f32 %v1441, %v1668
    %1670 = vmatmul.bf16.gmra.mxu0 %v1522
    %v1671 = vpop.f32.mrf.mxu0
    %v1672 = vadd.f32 %v1441, %v1671
    %v1673 = vpop.f32.mrf.mxu0
    %v1674 = vadd.f32 %v1441, %v1673
    %1675 = vdwg.mxu0
    %v1676 = vmax.f32 %v1597, 0.0
    %v1677 = vmax.f32 %v1599, 0.0
    %v1678 = vmax.f32 %v1602, 0.0
    %v1679 = vmax.f32 %v1604, 0.0
    %v1680 = vmax.f32 %v1607, 0.0
    %v1681 = vmax.f32 %v1609, 0.0
    %v1682 = vmax.f32 %v1612, 0.0
    %v1683 = vmax.f32 %v1614, 0.0
    %v1684 = vmax.f32 %v1617, 0.0
    %v1685 = vmax.f32 %v1619, 0.0
    %v1686 = vmax.f32 %v1622, 0.0
    %v1687 = vmax.f32 %v1624, 0.0
    %v1688 = vmax.f32 %v1627, 0.0
    %v1689 = vmax.f32 %v1629, 0.0
    %v1690 = vmax.f32 %v1632, 0.0
    %v1691 = vmax.f32 %v1634, 0.0
    %v1692 = vmax.f32 %v1637, 0.0
    %v1693 = vmax.f32 %v1639, 0.0
    %v1694 = vmax.f32 %v1642, 0.0
    %v1695 = vmax.f32 %v1644, 0.0
    %v1696 = vmax.f32 %v1647, 0.0
    %v1697 = vmax.f32 %v1649, 0.0
    %v1698 = vmax.f32 %v1652, 0.0
    %v1699 = vmax.f32 %v1654, 0.0
    %v1700 = vmax.f32 %v1657, 0.0
    %v1701 = vmax.f32 %v1659, 0.0
    %v1702 = vmax.f32 %v1662, 0.0
    %v1703 = vmax.f32 %v1664, 0.0
    %v1704 = vmax.f32 %v1667, 0.0
    %v1705 = vmax.f32 %v1669, 0.0
    %v1706 = vmax.f32 %v1672, 0.0
    %v1707 = vmax.f32 %v1674, 0.0
    %v1708 = vpack.c.bf16 %v1677, %v1676
    %v1709 = vpack.c.bf16 %v1679, %v1678
    %v1710 = vpack.c.bf16 %v1681, %v1680
    %v1711 = vpack.c.bf16 %v1683, %v1682
    %v1712 = vpack.c.bf16 %v1685, %v1684
    %v1713 = vpack.c.bf16 %v1687, %v1686
    %v1714 = vpack.c.bf16 %v1689, %v1688
    %v1715 = vpack.c.bf16 %v1691, %v1690
    %v1716 = vpack.c.bf16 %v1693, %v1692
    %v1717 = vpack.c.bf16 %v1695, %v1694
    %v1718 = vpack.c.bf16 %v1697, %v1696
    %v1719 = vpack.c.bf16 %v1699, %v1698
    %v1720 = vpack.c.bf16 %v1701, %v1700
    %v1721 = vpack.c.bf16 %v1703, %v1702
    %v1722 = vpack.c.bf16 %v1705, %v1704
    %v1723 = vpack.c.bf16 %v1707, %v1706
    %v1724 = vld [vmem:[#allocation14] sm:$0xf]
    %v1725 = vld [vmem:[#allocation14 + $0x4] sm:$0xf]
    %v1726 = vld [vmem:[#allocation14 + $0x8] sm:$0xf]
    %v1727 = vld [vmem:[#allocation14 + $0xc] sm:$0xf]
    %v1728 = vld [vmem:[#allocation14 + $0x10] sm:$0xf]
    %v1729 = vld [vmem:[#allocation14 + $0x14] sm:$0xf]
    %v1730 = vld [vmem:[#allocation14 + $0x18] sm:$0xf]
    %v1731 = vld [vmem:[#allocation14 + $0x1c] sm:$0xf]
    %v1732 = vld [vmem:[#allocation14 + $0x20] sm:$0xf]
    %v1733 = vld [vmem:[#allocation14 + $0x24] sm:$0xf]
    %v1734 = vld [vmem:[#allocation14 + $0x28] sm:$0xf]
    %v1735 = vld [vmem:[#allocation14 + $0x2c] sm:$0xf]
    %v1736 = vld [vmem:[#allocation14 + $0x30] sm:$0xf]
    %v1737 = vld [vmem:[#allocation14 + $0x34] sm:$0xf]
    %v1738 = vld [vmem:[#allocation14 + $0x38] sm:$0xf]
    %v1739 = vld [vmem:[#allocation14 + $0x3c] sm:$0xf]
    %v1740 = vld [vmem:[%s10] sm:$0x1]
    %v1742 = vperm.slane %v1740, 0
    %v1760 = vunpack.c.l.b16 %v1724
    %v1761 = vunpack.c.l.b16 %v1725
    %v1762 = vunpack.c.l.b16 %v1726
    %v1763 = vunpack.c.l.b16 %v1727
    %v1764 = vunpack.c.l.b16 %v1728
    %v1765 = vunpack.c.l.b16 %v1729
    %v1766 = vunpack.c.l.b16 %v1730
    %v1767 = vunpack.c.l.b16 %v1731
    %v1768 = vunpack.c.l.b16 %v1732
    %v1769 = vunpack.c.l.b16 %v1733
    %v1770 = vunpack.c.l.b16 %v1734
    %v1771 = vunpack.c.l.b16 %v1735
    %v1772 = vunpack.c.l.b16 %v1736
    %v1773 = vunpack.c.l.b16 %v1737
    %v1774 = vunpack.c.l.b16 %v1738
    %v1775 = vunpack.c.l.b16 %v1739
    %v1776 = vpack.c.b16 %v1761, %v1760
    %v1777 = vpack.c.b16 %v1763, %v1762
    %v1778 = vpack.c.b16 %v1765, %v1764
    %v1779 = vpack.c.b16 %v1767, %v1766
    %v1780 = vpack.c.b16 %v1769, %v1768
    %v1781 = vpack.c.b16 %v1771, %v1770
    %v1782 = vpack.c.b16 %v1773, %v1772
    %v1783 = vpack.c.b16 %v1775, %v1774
    %1792 = vmatpush.bf16.msra.mxu0 %v1783
    %1793 = vmatpush.bf16.msra.mxu0 %v1782
    %1794 = vmatpush.bf16.msra.mxu0 %v1781
    %1795 = vmatpush.bf16.msra.mxu0 %v1780
    %1796 = vmatpush.bf16.msra.mxu0 %v1779
    %1797 = vmatpush.bf16.msra.mxu0 %v1778
    %1798 = vmatpush.bf16.msra.mxu0 %v1777
    %1799 = vmatpush.bf16.msra.mxu0 %v1776
    %1800 = vmatmul.bf16.gmra.mxu0 %v1708
    %v1801 = vpop.f32.mrf.mxu0
    %v1802 = vadd.f32 %v1742, %v1801
    %v1803 = vpop.f32.mrf.mxu0
    %v1804 = vadd.f32 %v1742, %v1803
    %1805 = vmatmul.bf16.gmra.mxu0 %v1709
    %v1806 = vpop.f32.mrf.mxu0
    %v1807 = vadd.f32 %v1742, %v1806
    %v1808 = vpop.f32.mrf.mxu0
    %v1809 = vadd.f32 %v1742, %v1808
    %1810 = vmatmul.bf16.gmra.mxu0 %v1710
    %v1811 = vpop.f32.mrf.mxu0
    %v1812 = vadd.f32 %v1742, %v1811
    %v1813 = vpop.f32.mrf.mxu0
    %v1814 = vadd.f32 %v1742, %v1813
    %1815 = vmatmul.bf16.gmra.mxu0 %v1711
    %v1816 = vpop.f32.mrf.mxu0
    %v1817 = vadd.f32 %v1742, %v1816
    %v1818 = vpop.f32.mrf.mxu0
    %v1819 = vadd.f32 %v1742, %v1818
    %1820 = vmatmul.bf16.gmra.mxu0 %v1712
    %v1821 = vpop.f32.mrf.mxu0
    %v1822 = vadd.f32 %v1742, %v1821
    %v1823 = vpop.f32.mrf.mxu0
    %v1824 = vadd.f32 %v1742, %v1823
    %1825 = vmatmul.bf16.gmra.mxu0 %v1713
    %v1826 = vpop.f32.mrf.mxu0
    %v1827 = vadd.f32 %v1742, %v1826
    %v1828 = vpop.f32.mrf.mxu0
    %v1829 = vadd.f32 %v1742, %v1828
    %1830 = vmatmul.bf16.gmra.mxu0 %v1714
    %v1831 = vpop.f32.mrf.mxu0
    %v1832 = vadd.f32 %v1742, %v1831
    %v1833 = vpop.f32.mrf.mxu0
    %v1834 = vadd.f32 %v1742, %v1833
    %1835 = vmatmul.bf16.gmra.mxu0 %v1715
    %v1836 = vpop.f32.mrf.mxu0
    %v1837 = vadd.f32 %v1742, %v1836
    %v1838 = vpop.f32.mrf.mxu0
    %v1839 = vadd.f32 %v1742, %v1838
    %1840 = vmatmul.bf16.gmra.mxu0 %v1716
    %v1841 = vpop.f32.mrf.mxu0
    %v1842 = vadd.f32 %v1742, %v1841
    %v1843 = vpop.f32.mrf.mxu0
    %v1844 = vadd.f32 %v1742, %v1843
    %1845 = vmatmul.bf16.gmra.mxu0 %v1717
    %v1846 = vpop.f32.mrf.mxu0
    %v1847 = vadd.f32 %v1742, %v1846
    %v1848 = vpop.f32.mrf.mxu0
    %v1849 = vadd.f32 %v1742, %v1848
    %1850 = vmatmul.bf16.gmra.mxu0 %v1718
    %v1851 = vpop.f32.mrf.mxu0
    %v1852 = vadd.f32 %v1742, %v1851
    %v1853 = vpop.f32.mrf.mxu0
    %v1854 = vadd.f32 %v1742, %v1853
    %1855 = vmatmul.bf16.gmra.mxu0 %v1719
    %v1856 = vpop.f32.mrf.mxu0
    %v1857 = vadd.f32 %v1742, %v1856
    %v1858 = vpop.f32.mrf.mxu0
    %v1859 = vadd.f32 %v1742, %v1858
    %1860 = vmatmul.bf16.gmra.mxu0 %v1720
    %v1861 = vpop.f32.mrf.mxu0
    %v1862 = vadd.f32 %v1742, %v1861
    %v1863 = vpop.f32.mrf.mxu0
    %v1864 = vadd.f32 %v1742, %v1863
    %1865 = vmatmul.bf16.gmra.mxu0 %v1721
    %v1866 = vpop.f32.mrf.mxu0
    %v1867 = vadd.f32 %v1742, %v1866
    %v1868 = vpop.f32.mrf.mxu0
    %v1869 = vadd.f32 %v1742, %v1868
    %1870 = vmatmul.bf16.gmra.mxu0 %v1722
    %v1871 = vpop.f32.mrf.mxu0
    %v1872 = vadd.f32 %v1742, %v1871
    %v1873 = vpop.f32.mrf.mxu0
    %v1874 = vadd.f32 %v1742, %v1873
    %1875 = vmatmul.bf16.gmra.mxu0 %v1723
    %v1876 = vpop.f32.mrf.mxu0
    %v1877 = vadd.f32 %v1742, %v1876
    %v1878 = vpop.f32.mrf.mxu0
    %v1879 = vadd.f32 %v1742, %v1878
    %1880 = vdwg.mxu0
    %v1881 = vmax.f32 %v1802, 0.0
    %v1882 = vmax.f32 %v1804, 0.0
    %v1883 = vmax.f32 %v1807, 0.0
    %v1884 = vmax.f32 %v1809, 0.0
    %v1885 = vmax.f32 %v1812, 0.0
    %v1886 = vmax.f32 %v1814, 0.0
    %v1887 = vmax.f32 %v1817, 0.0
    %v1888 = vmax.f32 %v1819, 0.0
    %v1889 = vmax.f32 %v1822, 0.0
    %v1890 = vmax.f32 %v1824, 0.0
    %v1891 = vmax.f32 %v1827, 0.0
    %v1892 = vmax.f32 %v1829, 0.0
    %v1893 = vmax.f32 %v1832, 0.0
    %v1894 = vmax.f32 %v1834, 0.0
    %v1895 = vmax.f32 %v1837, 0.0
    %v1896 = vmax.f32 %v1839, 0.0
    %v1897 = vmax.f32 %v1842, 0.0
    %v1898 = vmax.f32 %v1844, 0.0
    %v1899 = vmax.f32 %v1847, 0.0
    %v1900 = vmax.f32 %v1849, 0.0
    %v1901 = vmax.f32 %v1852, 0.0
    %v1902 = vmax.f32 %v1854, 0.0
    %v1903 = vmax.f32 %v1857, 0.0
    %v1904 = vmax.f32 %v1859, 0.0
    %v1905 = vmax.f32 %v1862, 0.0
    %v1906 = vmax.f32 %v1864, 0.0
    %v1907 = vmax.f32 %v1867, 0.0
    %v1908 = vmax.f32 %v1869, 0.0
    %v1909 = vmax.f32 %v1872, 0.0
    %v1910 = vmax.f32 %v1874, 0.0
    %v1911 = vmax.f32 %v1877, 0.0
    %v1912 = vmax.f32 %v1879, 0.0
    %v1913 = vpack.c.bf16 %v1882, %v1881
    %v1914 = vpack.c.bf16 %v1884, %v1883
    %v1915 = vpack.c.bf16 %v1886, %v1885
    %v1916 = vpack.c.bf16 %v1888, %v1887
    %v1917 = vpack.c.bf16 %v1890, %v1889
    %v1918 = vpack.c.bf16 %v1892, %v1891
    %v1919 = vpack.c.bf16 %v1894, %v1893
    %v1920 = vpack.c.bf16 %v1896, %v1895
    %v1921 = vpack.c.bf16 %v1898, %v1897
    %v1922 = vpack.c.bf16 %v1900, %v1899
    %v1923 = vpack.c.bf16 %v1902, %v1901
    %v1924 = vpack.c.bf16 %v1904, %v1903
    %v1925 = vpack.c.bf16 %v1906, %v1905
    %v1926 = vpack.c.bf16 %v1908, %v1907
    %v1927 = vpack.c.bf16 %v1910, %v1909
    %v1928 = vpack.c.bf16 %v1912, %v1911
    %v1929 = vld [vmem:[#allocation16] sm:$0xf]
    %v1930 = vld [vmem:[#allocation16 + $0x4] sm:$0xf]
    %v1931 = vld [vmem:[#allocation16 + $0x8] sm:$0xf]
    %v1932 = vld [vmem:[#allocation16 + $0xc] sm:$0xf]
    %v1933 = vld [vmem:[#allocation16 + $0x10] sm:$0xf]
    %v1934 = vld [vmem:[#allocation16 + $0x14] sm:$0xf]
    %v1935 = vld [vmem:[#allocation16 + $0x18] sm:$0xf]
    %v1936 = vld [vmem:[#allocation16 + $0x1c] sm:$0xf]
    %v1937 = vld [vmem:[#allocation16 + $0x20] sm:$0xf]
    %v1938 = vld [vmem:[#allocation16 + $0x24] sm:$0xf]
    %v1939 = vld [vmem:[#allocation16 + $0x28] sm:$0xf]
    %v1940 = vld [vmem:[#allocation16 + $0x2c] sm:$0xf]
    %v1941 = vld [vmem:[#allocation16 + $0x30] sm:$0xf]
    %v1942 = vld [vmem:[#allocation16 + $0x34] sm:$0xf]
    %v1943 = vld [vmem:[#allocation16 + $0x38] sm:$0xf]
    %v1944 = vld [vmem:[#allocation16 + $0x3c] sm:$0xf]
    %v1945 = vld [vmem:[%s12] sm:$0x1]
    %v1947 = vperm.slane %v1945, 0
    %v1965 = vunpack.c.l.b16 %v1929
    %v1966 = vunpack.c.l.b16 %v1930
    %v1967 = vunpack.c.l.b16 %v1931
    %v1968 = vunpack.c.l.b16 %v1932
    %v1969 = vunpack.c.l.b16 %v1933
    %v1970 = vunpack.c.l.b16 %v1934
    %v1971 = vunpack.c.l.b16 %v1935
    %v1972 = vunpack.c.l.b16 %v1936
    %v1973 = vunpack.c.l.b16 %v1937
    %v1974 = vunpack.c.l.b16 %v1938
    %v1975 = vunpack.c.l.b16 %v1939
    %v1976 = vunpack.c.l.b16 %v1940
    %v1977 = vunpack.c.l.b16 %v1941
    %v1978 = vunpack.c.l.b16 %v1942
    %v1979 = vunpack.c.l.b16 %v1943
    %v1980 = vunpack.c.l.b16 %v1944
    %v1981 = vpack.c.b16 %v1966, %v1965
    %v1982 = vpack.c.b16 %v1968, %v1967
    %v1983 = vpack.c.b16 %v1970, %v1969
    %v1984 = vpack.c.b16 %v1972, %v1971
    %v1985 = vpack.c.b16 %v1974, %v1973
    %v1986 = vpack.c.b16 %v1976, %v1975
    %v1987 = vpack.c.b16 %v1978, %v1977
    %v1988 = vpack.c.b16 %v1980, %v1979
    %1997 = vmatpush.bf16.msra.mxu0 %v1988
    %1998 = vmatpush.bf16.msra.mxu0 %v1987
    %1999 = vmatpush.bf16.msra.mxu0 %v1986
    %2000 = vmatpush.bf16.msra.mxu0 %v1985
    %2001 = vmatpush.bf16.msra.mxu0 %v1984
    %2002 = vmatpush.bf16.msra.mxu0 %v1983
    %2003 = vmatpush.bf16.msra.mxu0 %v1982
    %2004 = vmatpush.bf16.msra.mxu0 %v1981
    %2005 = vmatmul.bf16.gmra.mxu0 %v1913
    %v2006 = vpop.f32.mrf.mxu0
    %v2007 = vadd.f32 %v1947, %v2006
    %v2008 = vpop.f32.mrf.mxu0
    %v2009 = vadd.f32 %v1947, %v2008
    %2010 = vmatmul.bf16.gmra.mxu0 %v1914
    %v2011 = vpop.f32.mrf.mxu0
    %v2012 = vadd.f32 %v1947, %v2011
    %v2013 = vpop.f32.mrf.mxu0
    %v2014 = vadd.f32 %v1947, %v2013
    %2015 = vmatmul.bf16.gmra.mxu0 %v1915
    %v2016 = vpop.f32.mrf.mxu0
    %v2017 = vadd.f32 %v1947, %v2016
    %v2018 = vpop.f32.mrf.mxu0
    %v2019 = vadd.f32 %v1947, %v2018
    %2020 = vmatmul.bf16.gmra.mxu0 %v1916
    %v2021 = vpop.f32.mrf.mxu0
    %v2022 = vadd.f32 %v1947, %v2021
    %v2023 = vpop.f32.mrf.mxu0
    %v2024 = vadd.f32 %v1947, %v2023
    %2025 = vmatmul.bf16.gmra.mxu0 %v1917
    %v2026 = vpop.f32.mrf.mxu0
    %v2027 = vadd.f32 %v1947, %v2026
    %v2028 = vpop.f32.mrf.mxu0
    %v2029 = vadd.f32 %v1947, %v2028
    %2030 = vmatmul.bf16.gmra.mxu0 %v1918
    %v2031 = vpop.f32.mrf.mxu0
    %v2032 = vadd.f32 %v1947, %v2031
    %v2033 = vpop.f32.mrf.mxu0
    %v2034 = vadd.f32 %v1947, %v2033
    %2035 = vmatmul.bf16.gmra.mxu0 %v1919
    %v2036 = vpop.f32.mrf.mxu0
    %v2037 = vadd.f32 %v1947, %v2036
    %v2038 = vpop.f32.mrf.mxu0
    %v2039 = vadd.f32 %v1947, %v2038
    %2040 = vmatmul.bf16.gmra.mxu0 %v1920
    %v2041 = vpop.f32.mrf.mxu0
    %v2042 = vadd.f32 %v1947, %v2041
    %v2043 = vpop.f32.mrf.mxu0
    %v2044 = vadd.f32 %v1947, %v2043
    %2045 = vmatmul.bf16.gmra.mxu0 %v1921
    %v2046 = vpop.f32.mrf.mxu0
    %v2047 = vadd.f32 %v1947, %v2046
    %v2048 = vpop.f32.mrf.mxu0
    %v2049 = vadd.f32 %v1947, %v2048
    %2050 = vmatmul.bf16.gmra.mxu0 %v1922
    %v2051 = vpop.f32.mrf.mxu0
    %v2052 = vadd.f32 %v1947, %v2051
    %v2053 = vpop.f32.mrf.mxu0
    %v2054 = vadd.f32 %v1947, %v2053
    %2055 = vmatmul.bf16.gmra.mxu0 %v1923
    %v2056 = vpop.f32.mrf.mxu0
    %v2057 = vadd.f32 %v1947, %v2056
    %v2058 = vpop.f32.mrf.mxu0
    %v2059 = vadd.f32 %v1947, %v2058
    %2060 = vmatmul.bf16.gmra.mxu0 %v1924
    %v2061 = vpop.f32.mrf.mxu0
    %v2062 = vadd.f32 %v1947, %v2061
    %v2063 = vpop.f32.mrf.mxu0
    %v2064 = vadd.f32 %v1947, %v2063
    %2065 = vmatmul.bf16.gmra.mxu0 %v1925
    %v2066 = vpop.f32.mrf.mxu0
    %v2067 = vadd.f32 %v1947, %v2066
    %v2068 = vpop.f32.mrf.mxu0
    %v2069 = vadd.f32 %v1947, %v2068
    %2070 = vmatmul.bf16.gmra.mxu0 %v1926
    %v2071 = vpop.f32.mrf.mxu0
    %v2072 = vadd.f32 %v1947, %v2071
    %v2073 = vpop.f32.mrf.mxu0
    %v2074 = vadd.f32 %v1947, %v2073
    %2075 = vmatmul.bf16.gmra.mxu0 %v1927
    %v2076 = vpop.f32.mrf.mxu0
    %v2077 = vadd.f32 %v1947, %v2076
    %v2078 = vpop.f32.mrf.mxu0
    %v2079 = vadd.f32 %v1947, %v2078
    %2080 = vmatmul.bf16.gmra.mxu0 %v1928
    %v2081 = vpop.f32.mrf.mxu0
    %v2082 = vadd.f32 %v1947, %v2081
    %v2083 = vpop.f32.mrf.mxu0
    %v2084 = vadd.f32 %v1947, %v2083
    %2085 = vdwg.mxu0
    %v2086 = vpack.c.bf16 %v2007, %v2007
    %v2087 = vpack.c.bf16 %v2009, %v2009
    %v2088 = vpack.c.bf16 %v2012, %v2012
    %v2089 = vpack.c.bf16 %v2014, %v2014
    %v2090 = vpack.c.bf16 %v2017, %v2017
    %v2091 = vpack.c.bf16 %v2019, %v2019
    %v2092 = vpack.c.bf16 %v2022, %v2022
    %v2093 = vpack.c.bf16 %v2024, %v2024
    %v2094 = vpack.c.bf16 %v2027, %v2027
    %v2095 = vpack.c.bf16 %v2029, %v2029
    %v2096 = vpack.c.bf16 %v2032, %v2032
    %v2097 = vpack.c.bf16 %v2034, %v2034
    %v2098 = vpack.c.bf16 %v2037, %v2037
    %v2099 = vpack.c.bf16 %v2039, %v2039
    %v2100 = vpack.c.bf16 %v2042, %v2042
    %v2101 = vpack.c.bf16 %v2044, %v2044
    %v2102 = vpack.c.bf16 %v2047, %v2047
    %v2103 = vpack.c.bf16 %v2049, %v2049
    %v2104 = vpack.c.bf16 %v2052, %v2052
    %v2105 = vpack.c.bf16 %v2054, %v2054
    %v2106 = vpack.c.bf16 %v2057, %v2057
    %v2107 = vpack.c.bf16 %v2059, %v2059
    %v2108 = vpack.c.bf16 %v2062, %v2062
    %v2109 = vpack.c.bf16 %v2064, %v2064
    %v2110 = vpack.c.bf16 %v2067, %v2067
    %v2111 = vpack.c.bf16 %v2069, %v2069
    %v2112 = vpack.c.bf16 %v2072, %v2072
    %v2113 = vpack.c.bf16 %v2074, %v2074
    %v2114 = vpack.c.bf16 %v2077, %v2077
    %v2115 = vpack.c.bf16 %v2079, %v2079
    %v2116 = vpack.c.bf16 %v2082, %v2082
    %v2117 = vpack.c.bf16 %v2084, %v2084
    %2118 = vst [vmem:[#allocation17] sm:$0xf] %v2086
    %2119 = vst [vmem:[#allocation17 + $0x4] sm:$0xf] %v2087
    %2120 = vst [vmem:[#allocation17 + $0x8] sm:$0xf] %v2088
    %2121 = vst [vmem:[#allocation17 + $0xc] sm:$0xf] %v2089
    %2122 = vst [vmem:[#allocation17 + $0x10] sm:$0xf] %v2090
    %2123 = vst [vmem:[#allocation17 + $0x14] sm:$0xf] %v2091
    %2124 = vst [vmem:[#allocation17 + $0x18] sm:$0xf] %v2092
    %2125 = vst [vmem:[#allocation17 + $0x1c] sm:$0xf] %v2093
    %2126 = vst [vmem:[#allocation17 + $0x20] sm:$0xf] %v2094
    %2127 = vst [vmem:[#allocation17 + $0x24] sm:$0xf] %v2095
    %2128 = vst [vmem:[#allocation17 + $0x28] sm:$0xf] %v2096
    %2129 = vst [vmem:[#allocation17 + $0x2c] sm:$0xf] %v2097
    %2130 = vst [vmem:[#allocation17 + $0x30] sm:$0xf] %v2098
    %2131 = vst [vmem:[#allocation17 + $0x34] sm:$0xf] %v2099
    %2132 = vst [vmem:[#allocation17 + $0x38] sm:$0xf] %v2100
    %2133 = vst [vmem:[#allocation17 + $0x3c] sm:$0xf] %v2101
    %2134 = vst [vmem:[#allocation17 + $0x40] sm:$0xf] %v2102
    %2135 = vst [vmem:[#allocation17 + $0x44] sm:$0xf] %v2103
    %2136 = vst [vmem:[#allocation17 + $0x48] sm:$0xf] %v2104
    %2137 = vst [vmem:[#allocation17 + $0x4c] sm:$0xf] %v2105
    %2138 = vst [vmem:[#allocation17 + $0x50] sm:$0xf] %v2106
    %2139 = vst [vmem:[#allocation17 + $0x54] sm:$0xf] %v2107
    %2140 = vst [vmem:[#allocation17 + $0x58] sm:$0xf] %v2108
    %2141 = vst [vmem:[#allocation17 + $0x5c] sm:$0xf] %v2109
    %2142 = vst [vmem:[#allocation17 + $0x60] sm:$0xf] %v2110
    %2143 = vst [vmem:[#allocation17 + $0x64] sm:$0xf] %v2111
    %2144 = vst [vmem:[#allocation17 + $0x68] sm:$0xf] %v2112
    %2145 = vst [vmem:[#allocation17 + $0x6c] sm:$0xf] %v2113
    %2146 = vst [vmem:[#allocation17 + $0x70] sm:$0xf] %v2114
    %2147 = vst [vmem:[#allocation17 + $0x74] sm:$0xf] %v2115
    %2148 = vst [vmem:[#allocation17 + $0x78] sm:$0xf] %v2116
    %2149 = vst [vmem:[#allocation17 + $0x7c] sm:$0xf] %v2117
    // Predicated region
    $region90: #{autoencoder_forward_padded.1} parent=1 // pred_check
      _
    $region91: #{autoencoder_forward_padded.1} parent=1 // pred_check_branch
      %2151 = sbr.rel (0) target = $region93
    $region92: #{autoencoder_forward_padded.1} parent=1 // pred_region
      %2153 = vsyncadd [#allocation4], 0
      %s2154 = sshll.u32 [#allocation17], 4
      %s2155 = int_to_ptr.vmem [resolvable:$true] %s2154
      %s2156 = sshll.u32 %s13, 4
      %s2157 = int_to_ptr.hbm [resolvable:$true] %s2156
      %2162 = dma.vmem_to_hbm [thread:$0]  %s2155, 2048, %s2157, [#allocation4], 64, 64, 4
    $region93: #{autoencoder_forward_padded.1} parent=1 // pred_fallthru
      _
    // Predicated region
    $region94: #{autoencoder_forward_padded.1} parent=1 // pred_check
      _
    $region95: #{autoencoder_forward_padded.1} parent=1 // pred_check_branch
      %2164 = sbr.rel (0) target = $region97
    $region96: #{autoencoder_forward_padded.1} parent=1 // pred_region
      %2166 = vsyncadd [#allocation19], 0
      %s2167 = sshll.u32 [#allocation18], 4
      %s2168 = int_to_ptr.vmem [resolvable:$true] %s2167
      %s2169 = sshll.u32 %s14, 4
      %s2170 = int_to_ptr.hbm [resolvable:$true] %s2169
      %2175 = dma.vmem_to_hbm [thread:$0]  %s2168, 2048, %s2170, [#allocation19], 64, 64, 4
    $region97: #{autoencoder_forward_padded.1} parent=1 // pred_fallthru
      _
    // Predicated region
    $region98: #{autoencoder_forward_padded.1} parent=1 // pred_check
      _
    $region99: #{autoencoder_forward_padded.1} parent=1 // pred_check_branch
      %2177 = sbr.rel (0) target = $region101
    $region100: #{autoencoder_forward_padded.1} parent=1 // pred_region
      %2179 = dma.done [#allocation4], 2048
    $region101: #{autoencoder_forward_padded.1} parent=1 // pred_fallthru
      _
    // Predicated region
    $region102: #{autoencoder_forward_padded.1} parent=1 // pred_check
      _
    $region103: #{autoencoder_forward_padded.1} parent=1 // pred_check_branch
      %2181 = sbr.rel (0) target = $region105
    $region104: #{autoencoder_forward_padded.1} parent=1 // pred_region
      %2183 = dma.done [#allocation19], 2048
    $region105: #{autoencoder_forward_padded.1} parent=1 // pred_fallthru
      _
    %2184 = vsyncpa [#allocation3], 1
    %2185 = vsyncpa [#allocation6], 1
    %2186 = vsyncpa [#allocation9], 1
    %2187 = vsyncpa [#allocation12], 1
    %2188 = vsyncpa [#allocation15], 1
    %2189 = vsyncpa [#allocation4], 1
    %2190 = vsyncpa [#allocation19], 1

</llo_original>
